<compile_context>
chip_gen: v7x
topology: tpu7x:2x2x1
jax: 0.10.0
libtpu: 0.0.40
codegen_flags: <defaults>
</compile_context>

<pallas_src>
import math

import numpy as np

import jax
import jax.numpy as jnp
from jax.experimental import pallas as pl
from jax.experimental.pallas import tpu as pltpu

_BN_EPS = 1e-5


# ----------------------------------------------------------------------------
# Host-side parameter packing: one lane-dense (R, 128) f32 slab, 8-row aligned
# ----------------------------------------------------------------------------
def _pack_params(named_arrays):
    """Pack [(name, array)] into a single (R, 128) f32 slab.

    Every entry starts at a row offset that is a multiple of 8 so all in-kernel
    static slices are sublane-tile aligned.  Returns (slab, offsets) with
    offsets[name] = (row0, rows, cols).
    """
    offsets = {}
    prepared = []
    row = 0
    for name, arr in named_arrays:
        a = np.asarray(jax.device_get(arr), dtype=np.float32)
        if a.ndim == 1:
            a = a[None, :]
        assert a.ndim == 2 and a.shape[1] <= 128, (name, a.shape)
        offsets[name] = (row, a.shape[0], a.shape[1])
        prepared.append((row, a))
        row += -(-a.shape[0] // 8) * 8  # next multiple of 8
    slab = np.zeros((row, 128), np.float32)
    for r0, a in prepared:
        slab[r0:r0 + a.shape[0], :a.shape[1]] = a
    return jnp.asarray(slab), offsets


def _bn_scale_shift(bn):
    # Fold eval-mode BatchNorm into y * scale + shift (hoisted out of the kernel).
    scale = bn["gamma"] * jax.lax.rsqrt(bn["var"] + _BN_EPS)
    shift = bn["beta"] - bn["mean"] * scale
    return scale, shift


def prepare_params(params):
    """Flatten + BN-fold all parameters into one packed slab (built once, reused)."""
    pa, pb = params["model_a"], params["model_b"]
    entries = []

    def add_lin(prefix, lin):
        entries.append((prefix + ".w", lin["w"]))
        entries.append((prefix + ".b", lin["b"]))

    def add_bn(prefix, bn):
        s, t = _bn_scale_shift(bn)
        entries.append((prefix + ".s", s))
        entries.append((prefix + ".t", t))

    def add_gat(prefix, g):
        entries.append((prefix + ".w", g["w"]))
        entries.append((prefix + ".att_dst", g["att_dst"]))
        entries.append((prefix + ".att_src", g["att_src"]))
        entries.append((prefix + ".bias", g["bias"]))

    add_gat("a.conv1", pa["conv1"]); add_bn("a.bn1", pa["bn1"])
    add_gat("a.conv2", pa["conv2"]); add_bn("a.bn2", pa["bn2"])
    add_lin("a.lin1", pa["lin1"]);   add_lin("a.lin2", pa["lin2"])

    add_lin("b.lin1", pb["lin1"]); add_bn("b.bn1", pb["bn1"])
    add_lin("b.lin2", pb["lin2"]); add_bn("b.bn2", pb["bn2"])
    add_lin("b.lin3", pb["lin3"]); add_bn("b.bn3", pb["bn3"])
    add_lin("b.lin4", pb["lin4"])

    add_lin("c.lin1", params["lin1"]); add_lin("c.lin2", params["lin2"])

    return _pack_params(entries)


# ----------------------------------------------------------------------------
# Fully fused forward kernel (single pallas_call, everything VMEM-resident)
# ----------------------------------------------------------------------------
def _make_fused_kernel(cfg, off):
    h1, c1 = cfg["heads1"], cfg["hc1"]
    h2, c2 = cfg["heads2"], cfg["hc2"]

    def kernel(x1_ref, adj_ref, pool_ref, x2_ref, p_ref, o_ref):
        def par(name):
            r0, r, c = off[name]            # static Python ints -> zero-cost Ref view
            return p_ref[r0:r0 + r, 0:c]

        def linear(x, prefix):
            return jnp.dot(x, par(prefix + ".w"),
                           preferred_element_type=jnp.float32) + par(prefix + ".b")

        def sigmoid(y):
            # Single EUP transcendental; exact [0, 1] range (no approx reciprocal).
            return 0.5 * (jnp.tanh(0.5 * y) + 1.0)

        adj = adj_ref[...]
        # Additive attention mask, computed ONCE and reused by both layers / all heads.
        neg_mask = jnp.where(adj > 0.0, 0.0, jnp.float32(-1e30))

        def gat(x, prefix, heads, out_ch):
            """Dense-masked GATConv (concat=True, leaky_relu 0.2, self-loops in adj)."""
            w = par(prefix + ".w")
            adst = par(prefix + ".att_dst")
            asrc = par(prefix + ".att_src")
            bias = par(prefix + ".bias")
            # Single lane-dense matmul for all heads: (N, F) @ (F, heads*C).
            hh = jnp.dot(x, w, preferred_element_type=jnp.float32)
            outs = []
            # heads is tiny (2) -> static unroll.  Sub-128 column slices / the final
            # concat are masked sub-vreg ops but negligible at these shapes; a
            # reshape/transpose-free block formulation is left for the tiled version.
            for h in range(heads):
                hh_h = hh[:, h * out_ch:(h + 1) * out_ch]                       # (N, C)
                # e[i, j] = a_dst . h_i + a_src . h_j   (i = dst row, j = src col)
                s_dst = jnp.sum(hh_h * adst[h:h + 1, :], axis=-1, keepdims=True)  # (N,1)
                s_src = jax.lax.dot_general(                                      # (1,N)
                    asrc[h:h + 1, :], hh_h, (((1,), (1,)), ((), ())),
                    preferred_element_type=jnp.float32)
                e = s_dst + s_src                                                 # (N,N)
                e = jnp.where(e > 0.0, e, 0.2 * e)                                # LeakyReLU
                e = e + neg_mask                                                  # mask (add)
                e = e - jnp.max(e, axis=1, keepdims=True)                         # per-dst max
                p = jnp.exp(e)                      # non-edges underflow to exactly 0
                inv = pl.reciprocal(jnp.sum(p, axis=1, keepdims=True), approx=True)
                # Normalize AFTER aggregation: scale (N,C), not the (N,N) matrix.
                outs.append(jnp.dot(p, hh_h, preferred_element_type=jnp.float32) * inv)
            return jnp.concatenate(outs, axis=1) + bias

        # -------------------- modelA: GAT branch (eval mode) --------------------
        x = gat(x1_ref[...], "a.conv1", h1, c1)
        x = jnp.maximum(x, 0.0) * par("a.bn1.s") + par("a.bn1.t")   # drop(id)->relu->bn1
        x = gat(x, "a.conv2", h2, c2)
        x = jnp.maximum(x, 0.0) * par("a.bn2.s") + par("a.bn2.t")   # drop(id)->relu->bn2
        x = jnp.dot(pool_ref[...], x, preferred_element_type=jnp.float32)  # mean pool
        x = jnp.maximum(linear(x, "a.lin1"), 0.0)                   # lin1->drop(id)->relu
        xa = sigmoid(linear(x, "a.lin2"))

        # -------------------- modelB: MLP branch (eval mode) --------------------
        y = x2_ref[...]
        y = jnp.maximum(linear(y, "b.lin1") * par("b.bn1.s") + par("b.bn1.t"), 0.0)
        y = jnp.maximum(linear(y, "b.lin2") * par("b.bn2.s") + par("b.bn2.t"), 0.0)
        y = jnp.maximum(linear(y, "b.lin3") * par("b.bn3.s") + par("b.bn3.t"), 0.0)
        xb = sigmoid(linear(y, "b.lin4"))

        # -------------------- combined head ------------------------------------
        z = jnp.concatenate([xa, xb], axis=1)                       # torch.cat(dim=1)
        z = jnp.maximum(linear(z, "c.lin1"), 0.0)
        o_ref[...] = sigmoid(linear(z, "c.lin2"))

    return kernel


def combined_forward(cfg, offsets, slab, x1, adj, pool_mat, x2):
    num_graphs = pool_mat.shape[0]
    num_classes = offsets["c.lin2.w"][2]
    vmem = pl.BlockSpec(memory_space=pltpu.MemorySpace.VMEM)
    return pl.pallas_call(
        _make_fused_kernel(cfg, offsets),
        out_shape=jax.ShapeDtypeStruct((num_graphs, num_classes), jnp.float32),
        in_specs=[vmem, vmem, vmem, vmem, vmem],
        out_specs=vmem,
        compiler_params=pltpu.CompilerParams(vmem_limit_bytes=32 * 1024 * 1024),
    )(x1, adj, pool_mat, x2, slab)


# ----------------------------------------------------------------------------
# Deterministic parameter initialization (synthetic; no checkpoint load)
# ----------------------------------------------------------------------------
def _init_linear(key, in_f, out_f):
    kw, kb = jax.random.split(key)
    bound = 1.0 / math.sqrt(in_f)
    return {
        "w": jax.random.uniform(kw, (in_f, out_f), jnp.float32, -bound, bound),
        "b": jax.random.uniform(kb, (1, out_f), jnp.float32, -bound, bound),
    }


def _init_bn(num_features):
    # PyTorch defaults: gamma=1, beta=0, running_mean=0, running_var=1
    return {
        "gamma": jnp.ones((1, num_features), jnp.float32),
        "beta": jnp.zeros((1, num_features), jnp.float32),
        "mean": jnp.zeros((1, num_features), jnp.float32),
        "var": jnp.ones((1, num_features), jnp.float32),
    }


def _init_gat(key, in_f, out_c, heads):
    kw, ks, kd = jax.random.split(key, 3)
    gw = math.sqrt(6.0 / (in_f + heads * out_c))
    ga = math.sqrt(6.0 / (out_c + 1))
    return {
        "w": jax.random.uniform(kw, (in_f, heads * out_c), jnp.float32, -gw, gw),
        "att_src": jax.random.uniform(ks, (heads, out_c), jnp.float32, -ga, ga),
        "att_dst": jax.random.uniform(kd, (heads, out_c), jnp.float32, -ga, ga),
        "bias": jnp.zeros((1, heads * out_c), jnp.float32),
    }


# ----------------------------------------------------------------------------
# Graph glue: densify edge_index and batch vector (host-side preprocessing)
# ----------------------------------------------------------------------------
def build_adj(edge_index, num_nodes):
    src, dst = edge_index[0], edge_index[1]
    adj = jnp.zeros((num_nodes, num_nodes), jnp.float32).at[dst, src].set(1.0)
    adj = jnp.maximum(adj, jnp.eye(num_nodes, dtype=jnp.float32))  # add_self_loops=True
    return adj


def build_pool(batch, num_graphs):
    onehot = (batch[None, :] == jnp.arange(num_graphs, dtype=batch.dtype)[:, None])
    onehot = onehot.astype(jnp.float32)
    counts = jnp.maximum(jnp.sum(onehot, axis=1, keepdims=True), 1.0)
    return onehot / counts


# ----------------------------------------------------------------------------
if __name__ == "__main__":
    key = jax.random.PRNGKey(0)

    # hyperparameters (small)
    N, F = 16, 8                      # nodes, num_node_features
    HC1, H1 = 8, 2                    # hidden_channels1, heads1
    HC2, H2 = 8, 2                    # hidden_channels2, heads2
    DENSE_A = 16                      # modelA dense_layer1
    B_IN, B_D1, B_D2, B_D3, B_OUT = 16, 32, 32, 16, 4   # modelB
    NUM_GRAPHS = 2
    TOTAL_IN = 1 + B_OUT              # modelA output (1) concat modelB output
    DENSE_C, NUM_CLASSES = 16, 3

    cfg = {"heads1": H1, "hc1": HC1, "heads2": H2, "hc2": HC2}

    keys = jax.random.split(key, 12)
    params = {
        "model_a": {
            "conv1": _init_gat(keys[0], F, HC1, H1),
            "conv2": _init_gat(keys[1], HC1 * H1, HC2, H2),
            "bn1": _init_bn(HC1 * H1),
            "bn2": _init_bn(HC2 * H2),
            "lin1": _init_linear(keys[2], HC2 * H2, DENSE_A),
            "lin2": _init_linear(keys[3], DENSE_A, 1),
        },
        "model_b": {
            "lin1": _init_linear(keys[4], B_IN, B_D1), "bn1": _init_bn(B_D1),
            "lin2": _init_linear(keys[5], B_D1, B_D2), "bn2": _init_bn(B_D2),
            "lin3": _init_linear(keys[6], B_D2, B_D3), "bn3": _init_bn(B_D3),
            "lin4": _init_linear(keys[7], B_D3, B_OUT),
        },
        "lin1": _init_linear(keys[8], TOTAL_IN, DENSE_C),
        "lin2": _init_linear(keys[9], DENSE_C, NUM_CLASSES),
    }

    # inputs
    x1 = jax.random.normal(keys[10], (N, F), jnp.float32)
    x2 = jax.random.normal(keys[11], (NUM_GRAPHS, B_IN), jnp.float32)

    # directed bidirectional ring within each graph (PyG convention: row0=src, row1=dst)
    nodes_per_graph = N // NUM_GRAPHS
    src_list, dst_list = [], []
    for g in range(NUM_GRAPHS):
        base = g * nodes_per_graph
        for i in range(nodes_per_graph):
            a = base + i
            b = base + (i + 1) % nodes_per_graph
            src_list += [a, b]
            dst_list += [b, a]
    edge_index = jnp.array([src_list, dst_list], dtype=jnp.int32)
    batch = jnp.repeat(jnp.arange(NUM_GRAPHS, dtype=jnp.int32), nodes_per_graph)

    adj = build_adj(edge_index, N)
    pool_mat = build_pool(batch, NUM_GRAPHS)

    # Pack all parameters ONCE into a single lane-dense VMEM slab (reused across calls).
    slab, offsets = prepare_params(params)

    fwd = jax.jit(lambda s, a, p_, b_, c_: combined_forward(cfg, offsets, s, a, p_, b_, c_))
    out = fwd(slab, x1, adj, pool_mat, x2)
    out = jax.block_until_ready(out)

    assert out.shape == (NUM_GRAPHS, NUM_CLASSES), out.shape
    assert bool(jnp.all(jnp.isfinite(out)))
    assert bool(jnp.all((out >= 0.0) & (out <= 1.0)))   # sigmoid output
    print("KERNEL_OK")
</pallas_src>

<mosaic_0001>
module attributes {stable_mosaic.version = 11 : i64} {
  func.func @kernel(%arg0: memref<16x8xf32, #tpu.memory_space<vmem>>, %arg1: memref<16x16xf32, #tpu.memory_space<vmem>>, %arg2: memref<2x16xf32, #tpu.memory_space<vmem>>, %arg3: memref<2x16xf32, #tpu.memory_space<vmem>>, %arg4: memref<368x128xf32, #tpu.memory_space<vmem>>, %arg5: memref<2x3xf32, #tpu.memory_space<vmem>>) attributes {dimension_semantics = [], scalar_prefetch = 0 : i64, scratch_operands = 0 : i64, tpu.core_type = #tpu.core_type<tc>} {
    %c0 = arith.constant 0 : index
    %c0_0 = arith.constant 0 : index
    %0 = vector.load %arg1[%c0, %c0_0] : memref<16x16xf32, #tpu.memory_space<vmem>>, vector<16x16xf32>
    %cst = arith.constant 0.000000e+00 : f32
    %1 = vector.broadcast %cst : f32 to vector<16x16xf32>
    %2 = arith.cmpf ogt, %0, %1 : vector<16x16xf32>
    %cst_1 = arith.constant 0.000000e+00 : f32
    %cst_2 = arith.constant -1.000000e+30 : f32
    %3 = vector.broadcast %cst_1 : f32 to vector<16x16xf32>
    %4 = vector.broadcast %cst_2 : f32 to vector<16x16xf32>
    %5 = arith.select %2, %3, %4 : vector<16x16xi1>, vector<16x16xf32>
    %c0_3 = arith.constant 0 : index
    %c0_4 = arith.constant 0 : index
    %6 = vector.load %arg0[%c0_3, %c0_4] : memref<16x8xf32, #tpu.memory_space<vmem>>, vector<16x8xf32>
    %c0_5 = arith.constant 0 : index
    %c0_6 = arith.constant 0 : index
    %7 = vector.load %arg4[%c0_5, %c0_6] : memref<368x128xf32, #tpu.memory_space<vmem>>, vector<8x16xf32>
    %c8 = arith.constant 8 : index
    %c0_7 = arith.constant 0 : index
    %8 = vector.load %arg4[%c8, %c0_7] : memref<368x128xf32, #tpu.memory_space<vmem>>, vector<2x8xf32>
    %c16 = arith.constant 16 : index
    %c0_8 = arith.constant 0 : index
    %9 = vector.load %arg4[%c16, %c0_8] : memref<368x128xf32, #tpu.memory_space<vmem>>, vector<2x8xf32>
    %c24 = arith.constant 24 : index
    %c0_9 = arith.constant 0 : index
    %10 = vector.load %arg4[%c24, %c0_9] : memref<368x128xf32, #tpu.memory_space<vmem>>, vector<1x16xf32>
    %cst_10 = arith.constant dense<0.000000e+00> : vector<16x16xf32>
    %11 = tpu.matmul %6, %7, %cst_10 {dimension_numbers = #tpu.dot_dimension_numbers<[1], [0], [0], [1], [0, 0, 1, 1], [], []>} : vector<16x8xf32>, vector<8x16xf32>, vector<16x16xf32> -> vector<16x16xf32>
    %12 = vector.extract_strided_slice %11 {offsets = [0, 0], sizes = [16, 8], strides = [1, 1]} : vector<16x16xf32> to vector<16x8xf32>
    %13 = vector.extract_strided_slice %8 {offsets = [0, 0], sizes = [1, 8], strides = [1, 1]} : vector<2x8xf32> to vector<1x8xf32>
    %14 = vector.broadcast %13 : vector<1x8xf32> to vector<16x8xf32>
    %15 = arith.mulf %12, %14 : vector<16x8xf32>
    %cst_11 = arith.constant dense<0.000000e+00> : vector<16xf32>
    %16 = vector.multi_reduction <add>, %15, %cst_11 [1] : vector<16x8xf32> to vector<16xf32>
    %17 = vector.shape_cast %16 : vector<16xf32> to vector<16x1xf32>
    %18 = vector.extract_strided_slice %9 {offsets = [0, 0], sizes = [1, 8], strides = [1, 1]} : vector<2x8xf32> to vector<1x8xf32>
    %cst_12 = arith.constant dense<0.000000e+00> : vector<1x16xf32>
    %19 = tpu.matmul %18, %12, %cst_12 {dimension_numbers = #tpu.dot_dimension_numbers<[1], [1], [0], [0], [0, 0, 1, 0], [], []>} : vector<1x8xf32>, vector<16x8xf32>, vector<1x16xf32> -> vector<1x16xf32>
    %20 = vector.broadcast %17 : vector<16x1xf32> to vector<16x16xf32>
    %21 = vector.broadcast %19 : vector<1x16xf32> to vector<16x16xf32>
    %22 = arith.addf %20, %21 : vector<16x16xf32>
    %cst_13 = arith.constant 0.000000e+00 : f32
    %23 = vector.broadcast %cst_13 : f32 to vector<16x16xf32>
    %24 = arith.cmpf ogt, %22, %23 : vector<16x16xf32>
    %cst_14 = arith.constant 2.000000e-01 : f32
    %25 = vector.broadcast %cst_14 : f32 to vector<16x16xf32>
    %26 = arith.mulf %25, %22 : vector<16x16xf32>
    %27 = arith.select %24, %22, %26 : vector<16x16xi1>, vector<16x16xf32>
    %28 = arith.addf %27, %5 : vector<16x16xf32>
    %cst_15 = arith.constant dense<0xFF800000> : vector<16xf32>
    %29 = vector.multi_reduction <maximumf>, %28, %cst_15 [1] : vector<16x16xf32> to vector<16xf32>
    %30 = vector.shape_cast %29 : vector<16xf32> to vector<16x1xf32>
    %31 = vector.broadcast %30 : vector<16x1xf32> to vector<16x16xf32>
    %32 = arith.subf %28, %31 : vector<16x16xf32>
    %33 = math.exp %32 : vector<16x16xf32>
    %cst_16 = arith.constant dense<0.000000e+00> : vector<16xf32>
    %34 = vector.multi_reduction <add>, %33, %cst_16 [1] : vector<16x16xf32> to vector<16xf32>
    %35 = vector.shape_cast %34 : vector<16xf32> to vector<16x1xf32>
    %36 = tpu.reciprocal %35 {approx = true} : vector<16x1xf32> -> vector<16x1xf32>
    %cst_17 = arith.constant dense<0.000000e+00> : vector<16x8xf32>
    %37 = tpu.matmul %33, %12, %cst_17 {dimension_numbers = #tpu.dot_dimension_numbers<[1], [0], [0], [1], [0, 0, 1, 1], [], []>} : vector<16x16xf32>, vector<16x8xf32>, vector<16x8xf32> -> vector<16x8xf32>
    %38 = vector.broadcast %36 : vector<16x1xf32> to vector<16x8xf32>
    %39 = arith.mulf %37, %38 : vector<16x8xf32>
    %40 = vector.extract_strided_slice %11 {offsets = [0, 8], sizes = [16, 8], strides = [1, 1]} : vector<16x16xf32> to vector<16x8xf32>
    %41 = vector.extract_strided_slice %8 {offsets = [1, 0], sizes = [1, 8], strides = [1, 1]} : vector<2x8xf32> to vector<1x8xf32>
    %42 = vector.broadcast %41 : vector<1x8xf32> to vector<16x8xf32>
    %43 = arith.mulf %40, %42 : vector<16x8xf32>
    %cst_18 = arith.constant dense<0.000000e+00> : vector<16xf32>
    %44 = vector.multi_reduction <add>, %43, %cst_18 [1] : vector<16x8xf32> to vector<16xf32>
    %45 = vector.shape_cast %44 : vector<16xf32> to vector<16x1xf32>
    %46 = vector.extract_strided_slice %9 {offsets = [1, 0], sizes = [1, 8], strides = [1, 1]} : vector<2x8xf32> to vector<1x8xf32>
    %cst_19 = arith.constant dense<0.000000e+00> : vector<1x16xf32>
    %47 = tpu.matmul %46, %40, %cst_19 {dimension_numbers = #tpu.dot_dimension_numbers<[1], [1], [0], [0], [0, 0, 1, 0], [], []>} : vector<1x8xf32>, vector<16x8xf32>, vector<1x16xf32> -> vector<1x16xf32>
    %48 = vector.broadcast %45 : vector<16x1xf32> to vector<16x16xf32>
    %49 = vector.broadcast %47 : vector<1x16xf32> to vector<16x16xf32>
    %50 = arith.addf %48, %49 : vector<16x16xf32>
    %cst_20 = arith.constant 0.000000e+00 : f32
    %51 = vector.broadcast %cst_20 : f32 to vector<16x16xf32>
    %52 = arith.cmpf ogt, %50, %51 : vector<16x16xf32>
    %cst_21 = arith.constant 2.000000e-01 : f32
    %53 = vector.broadcast %cst_21 : f32 to vector<16x16xf32>
    %54 = arith.mulf %53, %50 : vector<16x16xf32>
    %55 = arith.select %52, %50, %54 : vector<16x16xi1>, vector<16x16xf32>
    %56 = arith.addf %55, %5 : vector<16x16xf32>
    %cst_22 = arith.constant dense<0xFF800000> : vector<16xf32>
    %57 = vector.multi_reduction <maximumf>, %56, %cst_22 [1] : vector<16x16xf32> to vector<16xf32>
    %58 = vector.shape_cast %57 : vector<16xf32> to vector<16x1xf32>
    %59 = vector.broadcast %58 : vector<16x1xf32> to vector<16x16xf32>
    %60 = arith.subf %56, %59 : vector<16x16xf32>
    %61 = math.exp %60 : vector<16x16xf32>
    %cst_23 = arith.constant dense<0.000000e+00> : vector<16xf32>
    %62 = vector.multi_reduction <add>, %61, %cst_23 [1] : vector<16x16xf32> to vector<16xf32>
    %63 = vector.shape_cast %62 : vector<16xf32> to vector<16x1xf32>
    %64 = tpu.reciprocal %63 {approx = true} : vector<16x1xf32> -> vector<16x1xf32>
    %cst_24 = arith.constant dense<0.000000e+00> : vector<16x8xf32>
    %65 = tpu.matmul %61, %40, %cst_24 {dimension_numbers = #tpu.dot_dimension_numbers<[1], [0], [0], [1], [0, 0, 1, 1], [], []>} : vector<16x16xf32>, vector<16x8xf32>, vector<16x8xf32> -> vector<16x8xf32>
    %66 = vector.broadcast %64 : vector<16x1xf32> to vector<16x8xf32>
    %67 = arith.mulf %65, %66 : vector<16x8xf32>
    %68 = tpu.concatenate %39, %67 in 1 : vector<16x8xf32>, vector<16x8xf32> -> vector<16x16xf32>
    %69 = vector.broadcast %10 : vector<1x16xf32> to vector<16x16xf32>
    %70 = arith.addf %68, %69 : vector<16x16xf32>
    %cst_25 = arith.constant 0.000000e+00 : f32
    %71 = vector.broadcast %cst_25 : f32 to vector<16x16xf32>
    %72 = arith.maximumf %70, %71 : vector<16x16xf32>
    %c32 = arith.constant 32 : index
    %c0_26 = arith.constant 0 : index
    %73 = vector.load %arg4[%c32, %c0_26] : memref<368x128xf32, #tpu.memory_space<vmem>>, vector<1x16xf32>
    %74 = vector.broadcast %73 : vector<1x16xf32> to vector<16x16xf32>
    %75 = arith.mulf %72, %74 : vector<16x16xf32>
    %c40 = arith.constant 40 : index
    %c0_27 = arith.constant 0 : index
    %76 = vector.load %arg4[%c40, %c0_27] : memref<368x128xf32, #tpu.memory_space<vmem>>, vector<1x16xf32>
    %77 = vector.broadcast %76 : vector<1x16xf32> to vector<16x16xf32>
    %78 = arith.addf %75, %77 : vector<16x16xf32>
    %c48 = arith.constant 48 : index
    %c0_28 = arith.constant 0 : index
    %79 = vector.load %arg4[%c48, %c0_28] : memref<368x128xf32, #tpu.memory_space<vmem>>, vector<16x16xf32>
    %c64 = arith.constant 64 : index
    %c0_29 = arith.constant 0 : index
    %80 = vector.load %arg4[%c64, %c0_29] : memref<368x128xf32, #tpu.memory_space<vmem>>, vector<2x8xf32>
    %c72 = arith.constant 72 : index
    %c0_30 = arith.constant 0 : index
    %81 = vector.load %arg4[%c72, %c0_30] : memref<368x128xf32, #tpu.memory_space<vmem>>, vector<2x8xf32>
    %c80 = arith.constant 80 : index
    %c0_31 = arith.constant 0 : index
    %82 = vector.load %arg4[%c80, %c0_31] : memref<368x128xf32, #tpu.memory_space<vmem>>, vector<1x16xf32>
    %cst_32 = arith.constant dense<0.000000e+00> : vector<16x16xf32>
    %83 = tpu.matmul %78, %79, %cst_32 {dimension_numbers = #tpu.dot_dimension_numbers<[1], [0], [0], [1], [0, 0, 1, 1], [], []>} : vector<16x16xf32>, vector<16x16xf32>, vector<16x16xf32> -> vector<16x16xf32>
    %84 = vector.extract_strided_slice %83 {offsets = [0, 0], sizes = [16, 8], strides = [1, 1]} : vector<16x16xf32> to vector<16x8xf32>
    %85 = vector.extract_strided_slice %80 {offsets = [0, 0], sizes = [1, 8], strides = [1, 1]} : vector<2x8xf32> to vector<1x8xf32>
    %86 = vector.broadcast %85 : vector<1x8xf32> to vector<16x8xf32>
    %87 = arith.mulf %84, %86 : vector<16x8xf32>
    %cst_33 = arith.constant dense<0.000000e+00> : vector<16xf32>
    %88 = vector.multi_reduction <add>, %87, %cst_33 [1] : vector<16x8xf32> to vector<16xf32>
    %89 = vector.shape_cast %88 : vector<16xf32> to vector<16x1xf32>
    %90 = vector.extract_strided_slice %81 {offsets = [0, 0], sizes = [1, 8], strides = [1, 1]} : vector<2x8xf32> to vector<1x8xf32>
    %cst_34 = arith.constant dense<0.000000e+00> : vector<1x16xf32>
    %91 = tpu.matmul %90, %84, %cst_34 {dimension_numbers = #tpu.dot_dimension_numbers<[1], [1], [0], [0], [0, 0, 1, 0], [], []>} : vector<1x8xf32>, vector<16x8xf32>, vector<1x16xf32> -> vector<1x16xf32>
    %92 = vector.broadcast %89 : vector<16x1xf32> to vector<16x16xf32>
    %93 = vector.broadcast %91 : vector<1x16xf32> to vector<16x16xf32>
    %94 = arith.addf %92, %93 : vector<16x16xf32>
    %cst_35 = arith.constant 0.000000e+00 : f32
    %95 = vector.broadcast %cst_35 : f32 to vector<16x16xf32>
    %96 = arith.cmpf ogt, %94, %95 : vector<16x16xf32>
    %cst_36 = arith.constant 2.000000e-01 : f32
    %97 = vector.broadcast %cst_36 : f32 to vector<16x16xf32>
    %98 = arith.mulf %97, %94 : vector<16x16xf32>
    %99 = arith.select %96, %94, %98 : vector<16x16xi1>, vector<16x16xf32>
    %100 = arith.addf %99, %5 : vector<16x16xf32>
    %cst_37 = arith.constant dense<0xFF800000> : vector<16xf32>
    %101 = vector.multi_reduction <maximumf>, %100, %cst_37 [1] : vector<16x16xf32> to vector<16xf32>
    %102 = vector.shape_cast %101 : vector<16xf32> to vector<16x1xf32>
    %103 = vector.broadcast %102 : vector<16x1xf32> to vector<16x16xf32>
    %104 = arith.subf %100, %103 : vector<16x16xf32>
    %105 = math.exp %104 : vector<16x16xf32>
    %cst_38 = arith.constant dense<0.000000e+00> : vector<16xf32>
    %106 = vector.multi_reduction <add>, %105, %cst_38 [1] : vector<16x16xf32> to vector<16xf32>
    %107 = vector.shape_cast %106 : vector<16xf32> to vector<16x1xf32>
    %108 = tpu.reciprocal %107 {approx = true} : vector<16x1xf32> -> vector<16x1xf32>
    %cst_39 = arith.constant dense<0.000000e+00> : vector<16x8xf32>
    %109 = tpu.matmul %105, %84, %cst_39 {dimension_numbers = #tpu.dot_dimension_numbers<[1], [0], [0], [1], [0, 0, 1, 1], [], []>} : vector<16x16xf32>, vector<16x8xf32>, vector<16x8xf32> -> vector<16x8xf32>
    %110 = vector.broadcast %108 : vector<16x1xf32> to vector<16x8xf32>
    %111 = arith.mulf %109, %110 : vector<16x8xf32>
    %112 = vector.extract_strided_slice %83 {offsets = [0, 8], sizes = [16, 8], strides = [1, 1]} : vector<16x16xf32> to vector<16x8xf32>
    %113 = vector.extract_strided_slice %80 {offsets = [1, 0], sizes = [1, 8], strides = [1, 1]} : vector<2x8xf32> to vector<1x8xf32>
    %114 = vector.broadcast %113 : vector<1x8xf32> to vector<16x8xf32>
    %115 = arith.mulf %112, %114 : vector<16x8xf32>
    %cst_40 = arith.constant dense<0.000000e+00> : vector<16xf32>
    %116 = vector.multi_reduction <add>, %115, %cst_40 [1] : vector<16x8xf32> to vector<16xf32>
    %117 = vector.shape_cast %116 : vector<16xf32> to vector<16x1xf32>
    %118 = vector.extract_strided_slice %81 {offsets = [1, 0], sizes = [1, 8], strides = [1, 1]} : vector<2x8xf32> to vector<1x8xf32>
    %cst_41 = arith.constant dense<0.000000e+00> : vector<1x16xf32>
    %119 = tpu.matmul %118, %112, %cst_41 {dimension_numbers = #tpu.dot_dimension_numbers<[1], [1], [0], [0], [0, 0, 1, 0], [], []>} : vector<1x8xf32>, vector<16x8xf32>, vector<1x16xf32> -> vector<1x16xf32>
    %120 = vector.broadcast %117 : vector<16x1xf32> to vector<16x16xf32>
    %121 = vector.broadcast %119 : vector<1x16xf32> to vector<16x16xf32>
    %122 = arith.addf %120, %121 : vector<16x16xf32>
    %cst_42 = arith.constant 0.000000e+00 : f32
    %123 = vector.broadcast %cst_42 : f32 to vector<16x16xf32>
    %124 = arith.cmpf ogt, %122, %123 : vector<16x16xf32>
    %cst_43 = arith.constant 2.000000e-01 : f32
    %125 = vector.broadcast %cst_43 : f32 to vector<16x16xf32>
    %126 = arith.mulf %125, %122 : vector<16x16xf32>
    %127 = arith.select %124, %122, %126 : vector<16x16xi1>, vector<16x16xf32>
    %128 = arith.addf %127, %5 : vector<16x16xf32>
    %cst_44 = arith.constant dense<0xFF800000> : vector<16xf32>
    %129 = vector.multi_reduction <maximumf>, %128, %cst_44 [1] : vector<16x16xf32> to vector<16xf32>
    %130 = vector.shape_cast %129 : vector<16xf32> to vector<16x1xf32>
    %131 = vector.broadcast %130 : vector<16x1xf32> to vector<16x16xf32>
    %132 = arith.subf %128, %131 : vector<16x16xf32>
    %133 = math.exp %132 : vector<16x16xf32>
    %cst_45 = arith.constant dense<0.000000e+00> : vector<16xf32>
    %134 = vector.multi_reduction <add>, %133, %cst_45 [1] : vector<16x16xf32> to vector<16xf32>
    %135 = vector.shape_cast %134 : vector<16xf32> to vector<16x1xf32>
    %136 = tpu.reciprocal %135 {approx = true} : vector<16x1xf32> -> vector<16x1xf32>
    %cst_46 = arith.constant dense<0.000000e+00> : vector<16x8xf32>
    %137 = tpu.matmul %133, %112, %cst_46 {dimension_numbers = #tpu.dot_dimension_numbers<[1], [0], [0], [1], [0, 0, 1, 1], [], []>} : vector<16x16xf32>, vector<16x8xf32>, vector<16x8xf32> -> vector<16x8xf32>
    %138 = vector.broadcast %136 : vector<16x1xf32> to vector<16x8xf32>
    %139 = arith.mulf %137, %138 : vector<16x8xf32>
    %140 = tpu.concatenate %111, %139 in 1 : vector<16x8xf32>, vector<16x8xf32> -> vector<16x16xf32>
    %141 = vector.broadcast %82 : vector<1x16xf32> to vector<16x16xf32>
    %142 = arith.addf %140, %141 : vector<16x16xf32>
    %cst_47 = arith.constant 0.000000e+00 : f32
    %143 = vector.broadcast %cst_47 : f32 to vector<16x16xf32>
    %144 = arith.maximumf %142, %143 : vector<16x16xf32>
    %c88 = arith.constant 88 : index
    %c0_48 = arith.constant 0 : index
    %145 = vector.load %arg4[%c88, %c0_48] : memref<368x128xf32, #tpu.memory_space<vmem>>, vector<1x16xf32>
    %146 = vector.broadcast %145 : vector<1x16xf32> to vector<16x16xf32>
    %147 = arith.mulf %144, %146 : vector<16x16xf32>
    %c96 = arith.constant 96 : index
    %c0_49 = arith.constant 0 : index
    %148 = vector.load %arg4[%c96, %c0_49] : memref<368x128xf32, #tpu.memory_space<vmem>>, vector<1x16xf32>
    %149 = vector.broadcast %148 : vector<1x16xf32> to vector<16x16xf32>
    %150 = arith.addf %147, %149 : vector<16x16xf32>
    %c0_50 = arith.constant 0 : index
    %c0_51 = arith.constant 0 : index
    %151 = vector.load %arg2[%c0_50, %c0_51] : memref<2x16xf32, #tpu.memory_space<vmem>>, vector<2x16xf32>
    %cst_52 = arith.constant dense<0.000000e+00> : vector<2x16xf32>
    %152 = tpu.matmul %151, %150, %cst_52 {dimension_numbers = #tpu.dot_dimension_numbers<[1], [0], [0], [1], [0, 0, 1, 1], [], []>} : vector<2x16xf32>, vector<16x16xf32>, vector<2x16xf32> -> vector<2x16xf32>
    %c104 = arith.constant 104 : index
    %c0_53 = arith.constant 0 : index
    %153 = vector.load %arg4[%c104, %c0_53] : memref<368x128xf32, #tpu.memory_space<vmem>>, vector<16x16xf32>
    %cst_54 = arith.constant dense<0.000000e+00> : vector<2x16xf32>
    %154 = tpu.matmul %152, %153, %cst_54 {dimension_numbers = #tpu.dot_dimension_numbers<[1], [0], [0], [1], [0, 0, 1, 1], [], []>} : vector<2x16xf32>, vector<16x16xf32>, vector<2x16xf32> -> vector<2x16xf32>
    %c120 = arith.constant 120 : index
    %c0_55 = arith.constant 0 : index
    %155 = vector.load %arg4[%c120, %c0_55] : memref<368x128xf32, #tpu.memory_space<vmem>>, vector<1x16xf32>
    %156 = vector.broadcast %155 : vector<1x16xf32> to vector<2x16xf32>
    %157 = arith.addf %154, %156 : vector<2x16xf32>
    %cst_56 = arith.constant 0.000000e+00 : f32
    %158 = vector.broadcast %cst_56 : f32 to vector<2x16xf32>
    %159 = arith.maximumf %157, %158 : vector<2x16xf32>
    %c128 = arith.constant 128 : index
    %c0_57 = arith.constant 0 : index
    %160 = vector.load %arg4[%c128, %c0_57] : memref<368x128xf32, #tpu.memory_space<vmem>>, vector<16x1xf32>
    %cst_58 = arith.constant dense<0.000000e+00> : vector<2x1xf32>
    %161 = tpu.matmul %159, %160, %cst_58 {dimension_numbers = #tpu.dot_dimension_numbers<[1], [0], [0], [1], [0, 0, 1, 1], [], []>} : vector<2x16xf32>, vector<16x1xf32>, vector<2x1xf32> -> vector<2x1xf32>
    %c144 = arith.constant 144 : index
    %c0_59 = arith.constant 0 : index
    %162 = vector.load %arg4[%c144, %c0_59] : memref<368x128xf32, #tpu.memory_space<vmem>>, vector<1x1xf32>
    %163 = vector.broadcast %162 : vector<1x1xf32> to vector<2x1xf32>
    %164 = arith.addf %161, %163 : vector<2x1xf32>
    %cst_60 = arith.constant 5.000000e-01 : f32
    %165 = vector.broadcast %cst_60 : f32 to vector<2x1xf32>
    %166 = arith.mulf %165, %164 : vector<2x1xf32>
    %167 = math.tanh %166 : vector<2x1xf32>
    %cst_61 = arith.constant 1.000000e+00 : f32
    %168 = vector.broadcast %cst_61 : f32 to vector<2x1xf32>
    %169 = arith.addf %167, %168 : vector<2x1xf32>
    %cst_62 = arith.constant 5.000000e-01 : f32
    %170 = vector.broadcast %cst_62 : f32 to vector<2x1xf32>
    %171 = arith.mulf %170, %169 : vector<2x1xf32>
    %c0_63 = arith.constant 0 : index
    %c0_64 = arith.constant 0 : index
    %172 = vector.load %arg3[%c0_63, %c0_64] : memref<2x16xf32, #tpu.memory_space<vmem>>, vector<2x16xf32>
    %c152 = arith.constant 152 : index
    %c0_65 = arith.constant 0 : index
    %173 = vector.load %arg4[%c152, %c0_65] : memref<368x128xf32, #tpu.memory_space<vmem>>, vector<16x32xf32>
    %cst_66 = arith.constant dense<0.000000e+00> : vector<2x32xf32>
    %174 = tpu.matmul %172, %173, %cst_66 {dimension_numbers = #tpu.dot_dimension_numbers<[1], [0], [0], [1], [0, 0, 1, 1], [], []>} : vector<2x16xf32>, vector<16x32xf32>, vector<2x32xf32> -> vector<2x32xf32>
    %c168 = arith.constant 168 : index
    %c0_67 = arith.constant 0 : index
    %175 = vector.load %arg4[%c168, %c0_67] : memref<368x128xf32, #tpu.memory_space<vmem>>, vector<1x32xf32>
    %176 = vector.broadcast %175 : vector<1x32xf32> to vector<2x32xf32>
    %177 = arith.addf %174, %176 : vector<2x32xf32>
    %c176 = arith.constant 176 : index
    %c0_68 = arith.constant 0 : index
    %178 = vector.load %arg4[%c176, %c0_68] : memref<368x128xf32, #tpu.memory_space<vmem>>, vector<1x32xf32>
    %179 = vector.broadcast %178 : vector<1x32xf32> to vector<2x32xf32>
    %180 = arith.mulf %177, %179 : vector<2x32xf32>
    %c184 = arith.constant 184 : index
    %c0_69 = arith.constant 0 : index
    %181 = vector.load %arg4[%c184, %c0_69] : memref<368x128xf32, #tpu.memory_space<vmem>>, vector<1x32xf32>
    %182 = vector.broadcast %181 : vector<1x32xf32> to vector<2x32xf32>
    %183 = arith.addf %180, %182 : vector<2x32xf32>
    %cst_70 = arith.constant 0.000000e+00 : f32
    %184 = vector.broadcast %cst_70 : f32 to vector<2x32xf32>
    %185 = arith.maximumf %183, %184 : vector<2x32xf32>
    %c192 = arith.constant 192 : index
    %c0_71 = arith.constant 0 : index
    %186 = vector.load %arg4[%c192, %c0_71] : memref<368x128xf32, #tpu.memory_space<vmem>>, vector<32x32xf32>
    %cst_72 = arith.constant dense<0.000000e+00> : vector<2x32xf32>
    %187 = tpu.matmul %185, %186, %cst_72 {dimension_numbers = #tpu.dot_dimension_numbers<[1], [0], [0], [1], [0, 0, 1, 1], [], []>} : vector<2x32xf32>, vector<32x32xf32>, vector<2x32xf32> -> vector<2x32xf32>
    %c224 = arith.constant 224 : index
    %c0_73 = arith.constant 0 : index
    %188 = vector.load %arg4[%c224, %c0_73] : memref<368x128xf32, #tpu.memory_space<vmem>>, vector<1x32xf32>
    %189 = vector.broadcast %188 : vector<1x32xf32> to vector<2x32xf32>
    %190 = arith.addf %187, %189 : vector<2x32xf32>
    %c232 = arith.constant 232 : index
    %c0_74 = arith.constant 0 : index
    %191 = vector.load %arg4[%c232, %c0_74] : memref<368x128xf32, #tpu.memory_space<vmem>>, vector<1x32xf32>
    %192 = vector.broadcast %191 : vector<1x32xf32> to vector<2x32xf32>
    %193 = arith.mulf %190, %192 : vector<2x32xf32>
    %c240 = arith.constant 240 : index
    %c0_75 = arith.constant 0 : index
    %194 = vector.load %arg4[%c240, %c0_75] : memref<368x128xf32, #tpu.memory_space<vmem>>, vector<1x32xf32>
    %195 = vector.broadcast %194 : vector<1x32xf32> to vector<2x32xf32>
    %196 = arith.addf %193, %195 : vector<2x32xf32>
    %cst_76 = arith.constant 0.000000e+00 : f32
    %197 = vector.broadcast %cst_76 : f32 to vector<2x32xf32>
    %198 = arith.maximumf %196, %197 : vector<2x32xf32>
    %c248 = arith.constant 248 : index
    %c0_77 = arith.constant 0 : index
    %199 = vector.load %arg4[%c248, %c0_77] : memref<368x128xf32, #tpu.memory_space<vmem>>, vector<32x16xf32>
    %cst_78 = arith.constant dense<0.000000e+00> : vector<2x16xf32>
    %200 = tpu.matmul %198, %199, %cst_78 {dimension_numbers = #tpu.dot_dimension_numbers<[1], [0], [0], [1], [0, 0, 1, 1], [], []>} : vector<2x32xf32>, vector<32x16xf32>, vector<2x16xf32> -> vector<2x16xf32>
    %c280 = arith.constant 280 : index
    %c0_79 = arith.constant 0 : index
    %201 = vector.load %arg4[%c280, %c0_79] : memref<368x128xf32, #tpu.memory_space<vmem>>, vector<1x16xf32>
    %202 = vector.broadcast %201 : vector<1x16xf32> to vector<2x16xf32>
    %203 = arith.addf %200, %202 : vector<2x16xf32>
    %c288 = arith.constant 288 : index
    %c0_80 = arith.constant 0 : index
    %204 = vector.load %arg4[%c288, %c0_80] : memref<368x128xf32, #tpu.memory_space<vmem>>, vector<1x16xf32>
    %205 = vector.broadcast %204 : vector<1x16xf32> to vector<2x16xf32>
    %206 = arith.mulf %203, %205 : vector<2x16xf32>
    %c296 = arith.constant 296 : index
    %c0_81 = arith.constant 0 : index
    %207 = vector.load %arg4[%c296, %c0_81] : memref<368x128xf32, #tpu.memory_space<vmem>>, vector<1x16xf32>
    %208 = vector.broadcast %207 : vector<1x16xf32> to vector<2x16xf32>
    %209 = arith.addf %206, %208 : vector<2x16xf32>
    %cst_82 = arith.constant 0.000000e+00 : f32
    %210 = vector.broadcast %cst_82 : f32 to vector<2x16xf32>
    %211 = arith.maximumf %209, %210 : vector<2x16xf32>
    %c304 = arith.constant 304 : index
    %c0_83 = arith.constant 0 : index
    %212 = vector.load %arg4[%c304, %c0_83] : memref<368x128xf32, #tpu.memory_space<vmem>>, vector<16x4xf32>
    %cst_84 = arith.constant dense<0.000000e+00> : vector<2x4xf32>
    %213 = tpu.matmul %211, %212, %cst_84 {dimension_numbers = #tpu.dot_dimension_numbers<[1], [0], [0], [1], [0, 0, 1, 1], [], []>} : vector<2x16xf32>, vector<16x4xf32>, vector<2x4xf32> -> vector<2x4xf32>
    %c320 = arith.constant 320 : index
    %c0_85 = arith.constant 0 : index
    %214 = vector.load %arg4[%c320, %c0_85] : memref<368x128xf32, #tpu.memory_space<vmem>>, vector<1x4xf32>
    %215 = vector.broadcast %214 : vector<1x4xf32> to vector<2x4xf32>
    %216 = arith.addf %213, %215 : vector<2x4xf32>
    %cst_86 = arith.constant 5.000000e-01 : f32
    %217 = vector.broadcast %cst_86 : f32 to vector<2x4xf32>
    %218 = arith.mulf %217, %216 : vector<2x4xf32>
    %219 = math.tanh %218 : vector<2x4xf32>
    %cst_87 = arith.constant 1.000000e+00 : f32
    %220 = vector.broadcast %cst_87 : f32 to vector<2x4xf32>
    %221 = arith.addf %219, %220 : vector<2x4xf32>
    %cst_88 = arith.constant 5.000000e-01 : f32
    %222 = vector.broadcast %cst_88 : f32 to vector<2x4xf32>
    %223 = arith.mulf %222, %221 : vector<2x4xf32>
    %224 = tpu.concatenate %171, %223 in 1 : vector<2x1xf32>, vector<2x4xf32> -> vector<2x5xf32>
    %c328 = arith.constant 328 : index
    %c0_89 = arith.constant 0 : index
    %225 = vector.load %arg4[%c328, %c0_89] : memref<368x128xf32, #tpu.memory_space<vmem>>, vector<5x16xf32>
    %cst_90 = arith.constant dense<0.000000e+00> : vector<2x16xf32>
    %226 = tpu.matmul %224, %225, %cst_90 {dimension_numbers = #tpu.dot_dimension_numbers<[1], [0], [0], [1], [0, 0, 1, 1], [], []>} : vector<2x5xf32>, vector<5x16xf32>, vector<2x16xf32> -> vector<2x16xf32>
    %c336 = arith.constant 336 : index
    %c0_91 = arith.constant 0 : index
    %227 = vector.load %arg4[%c336, %c0_91] : memref<368x128xf32, #tpu.memory_space<vmem>>, vector<1x16xf32>
    %228 = vector.broadcast %227 : vector<1x16xf32> to vector<2x16xf32>
    %229 = arith.addf %226, %228 : vector<2x16xf32>
    %cst_92 = arith.constant 0.000000e+00 : f32
    %230 = vector.broadcast %cst_92 : f32 to vector<2x16xf32>
    %231 = arith.maximumf %229, %230 : vector<2x16xf32>
    %c344 = arith.constant 344 : index
    %c0_93 = arith.constant 0 : index
    %232 = vector.load %arg4[%c344, %c0_93] : memref<368x128xf32, #tpu.memory_space<vmem>>, vector<16x3xf32>
    %cst_94 = arith.constant dense<0.000000e+00> : vector<2x3xf32>
    %233 = tpu.matmul %231, %232, %cst_94 {dimension_numbers = #tpu.dot_dimension_numbers<[1], [0], [0], [1], [0, 0, 1, 1], [], []>} : vector<2x16xf32>, vector<16x3xf32>, vector<2x3xf32> -> vector<2x3xf32>
    %c360 = arith.constant 360 : index
    %c0_95 = arith.constant 0 : index
    %234 = vector.load %arg4[%c360, %c0_95] : memref<368x128xf32, #tpu.memory_space<vmem>>, vector<1x3xf32>
    %235 = vector.broadcast %234 : vector<1x3xf32> to vector<2x3xf32>
    %236 = arith.addf %233, %235 : vector<2x3xf32>
    %cst_96 = arith.constant 5.000000e-01 : f32
    %237 = vector.broadcast %cst_96 : f32 to vector<2x3xf32>
    %238 = arith.mulf %237, %236 : vector<2x3xf32>
    %239 = math.tanh %238 : vector<2x3xf32>
    %cst_97 = arith.constant 1.000000e+00 : f32
    %240 = vector.broadcast %cst_97 : f32 to vector<2x3xf32>
    %241 = arith.addf %239, %240 : vector<2x3xf32>
    %cst_98 = arith.constant 5.000000e-01 : f32
    %242 = vector.broadcast %cst_98 : f32 to vector<2x3xf32>
    %243 = arith.mulf %242, %241 : vector<2x3xf32>
    %c0_99 = arith.constant 0 : index
    %c0_100 = arith.constant 0 : index
    %244 = vector.load %arg5[%c0_99, %c0_100] : memref<2x3xf32, #tpu.memory_space<vmem>>, vector<2x3xf32>
    tpu.vector_store %arg5[%c0_99, %c0_100], %243 {strides = array<i32>} : memref<2x3xf32, #tpu.memory_space<vmem>>, vector<2x3xf32>,
    return
  }
}

</mosaic_0001>

<llo_original>
// kernel: _lambda_.1
$region0: #{_lambda_.1}
  #allocation0 [shape = 'u32[]', space=smem, size = 0x4, offset = 0x4, fixed_abs, tag = 'smem constant byte address 0x4 - core index']
  #allocation1 [shape = 'u32[144,128]{1,0:T(1,128)}', space=vmem, size = 0x12000, scoped, tag = 'internal scratch']
  %s0 = inlined_call_operand.vmem [shape: f32[16,8], index: 0, kind: input, shape index: {}]
  %s1 = inlined_call_operand.vmem [shape: f32[16,16], index: 1, kind: input, shape index: {}]
  %s2 = inlined_call_operand.vmem [shape: f32[2,16], index: 2, kind: input, shape index: {}]
  %s3 = inlined_call_operand.vmem [shape: f32[2,16], index: 3, kind: input, shape index: {}]
  %s4 = inlined_call_operand.hbm [shape: f32[368,128], index: 4, kind: input, shape index: {}]
  %s5 = inlined_call_operand.hbm [shape: f32[2,3], index: 5, kind: output, shape index: {}]
  %s6 = sld [smem:[#allocation0]]
  $region34: #{_lambda_.1} parent=0
    _
  %s8 = ssub.s32 1, %s6
  %s9 = scalar_select 0, %s8, %s6
  $region1: #{_lambda_.1} parent=0
    #allocation2 [shape = 'u8[188416]{0}', space=vmem, size = 0x2e000, scoped, tag = 'input window, operand 4, single buffered']
    #allocation3 [shape = 's32[1]{0}', space=sflag, size = 0x4, scoped, tag = 'scoped memory for _lambda_.1']
    #allocation4 [shape = 's32[1]{0}', space=sflag, size = 0x4, scoped, tag = 'scoped memory for _lambda_.1']
    #allocation5 [shape = 'u8[1024]{0}', space=vmem, size = 0x400, scoped, tag = 'output window, operand 0, single buffered']
    %10 = vsyncpa [#allocation3], 0
    %11 = vsyncpa [#allocation4], 0
    // Predicated region
    $region2: #{_lambda_.1} parent=1 // pred_check
      _
    $region3: #{_lambda_.1} parent=1 // pred_check_branch
      %13 = sbr.rel (0) target = $region5
    $region4: #{_lambda_.1} parent=1 // pred_region
      _
    $region5: #{_lambda_.1} parent=1 // pred_fallthru
      _
    // Predicated region
    $region6: #{_lambda_.1} parent=1 // pred_check
      _
    $region7: #{_lambda_.1} parent=1 // pred_check_branch
      %15 = sbr.rel (0) target = $region9
    $region8: #{_lambda_.1} parent=1 // pred_region
      _
    $region9: #{_lambda_.1} parent=1 // pred_fallthru
      _
    // Predicated region
    $region10: #{_lambda_.1} parent=1 // pred_check
      _
    $region11: #{_lambda_.1} parent=1 // pred_check_branch
      %17 = sbr.rel (0) target = $region13
    $region12: #{_lambda_.1} parent=1 // pred_region
      _
    $region13: #{_lambda_.1} parent=1 // pred_fallthru
      _
    // Predicated region
    $region14: #{_lambda_.1} parent=1 // pred_check
      _
    $region15: #{_lambda_.1} parent=1 // pred_check_branch
      %19 = sbr.rel (0) target = $region17
    $region16: #{_lambda_.1} parent=1 // pred_region
      _
    $region17: #{_lambda_.1} parent=1 // pred_fallthru
      _
    // Predicated region
    $region18: #{_lambda_.1} parent=1 // pred_check
      _
    $region19: #{_lambda_.1} parent=1 // pred_check_branch
      %21 = sbr.rel (0) target = $region21
    $region20: #{_lambda_.1} parent=1 // pred_region
      %s23 = ssub.s32 5888, 5888
      %24 = vsyncadd [#allocation3], %s23
      %s25 = sshll.u32 [#allocation2], 4
      %s26 = int_to_ptr.vmem [resolvable:$true] %s25
      %31 = dma.hbm_to_vmem [thread:$0]  %s4, 5888, %s26, [#allocation3], 128, 128, 8
    $region21: #{_lambda_.1} parent=1 // pred_fallthru
      _
    // Predicated region
    $region22: #{_lambda_.1} parent=1 // pred_check
      _
    $region23: #{_lambda_.1} parent=1 // pred_check_branch
      %33 = sbr.rel (0) target = $region25
    $region24: #{_lambda_.1} parent=1 // pred_region
      %34 = dma.done [#allocation3], 5888
    $region25: #{_lambda_.1} parent=1 // pred_fallthru
      _
    %v35 = vld [vmem:[%s1] sm:$0xff]
    %v36 = vld [vmem:[%s1 + $0x8] sm:$0xff]
    %vm37 = vcmp.gt.f32.partialorder %v35, 0.0
    %vm38 = vcmp.gt.f32.partialorder %v36, 0.0
    %v39 = vsel %vm37, 0.0, -1e+30
    %v40 = vsel %vm38, 0.0, -1e+30
    %v41 = vld [vmem:[%s0] sm:$0xff]
    %v42 = vld [vmem:[%s0 + $0x8] sm:$0xff]
    %v43 = vld [vmem:[#allocation2] sm:$0xff]
    %v44 = vld [vmem:[#allocation2 + $0x8] sm:$0x3]
    %v45 = vld [vmem:[#allocation2 + $0x10] sm:$0x3]
    %v46 = vld [vmem:[#allocation2 + $0x18] sm:$0x1]
    %vm47 = vcmask 64512
    %v49 = vsel %vm47, %v41, 0
    %v52 = vsel %vm47, %v42, 0
    %54 = vmatprep.subr.mxu0 0.0
    %55 = vmatpush1.msra.mxu0 %v43
    %56 = vmatprep.subr.mxu0 0.0
    %57 = vmatpush1.msra.mxu0 0.0
    %58 = vmatprep.subr.mxu0 0.0
    %59 = vmatpush1.msra.mxu0 0.0
    %60 = vmatprep.subr.mxu0 0.0
    %61 = vmatpush1.msra.mxu0 0.0
    %62 = vmatprep.subr.mxu0 0.0
    %63 = vmatpush1.msra.mxu0 0.0
    %64 = vmatprep.subr.mxu0 0.0
    %65 = vmatpush1.msra.mxu0 0.0
    %66 = vmatprep.subr.mxu0 0.0
    %67 = vmatpush1.msra.mxu0 0.0
    %68 = vmatprep.subr.mxu0 0.0
    %69 = vmatpush1.msra.mxu0 0.0
    %70 = vmatprep.subr.mxu0 0.0
    %71 = vmatpush1.msra.mxu0 0.0
    %72 = vmatprep.subr.mxu0 0.0
    %73 = vmatpush1.msra.mxu0 0.0
    %74 = vmatprep.subr.mxu0 0.0
    %75 = vmatpush1.msra.mxu0 0.0
    %76 = vmatprep.subr.mxu0 0.0
    %77 = vmatpush1.msra.mxu0 0.0
    %78 = vmatprep.subr.mxu0 0.0
    %79 = vmatpush1.msra.mxu0 0.0
    %80 = vmatprep.subr.mxu0 0.0
    %81 = vmatpush1.msra.mxu0 0.0
    %82 = vmatprep.subr.mxu0 0.0
    %83 = vmatpush1.msra.mxu0 0.0
    %84 = vmatprep.subr.mxu0 0.0
    %85 = vmatpush1.msra.mxu0 0.0
    %86 = vmatprep.subr.mxu0 0.0
    %87 = vmatpush1.msra.mxu0 0.0
    %88 = vmatprep.subr.mxu0 0.0
    %89 = vmatpush1.msra.mxu0 0.0
    %90 = vmatprep.subr.mxu0 0.0
    %91 = vmatpush1.msra.mxu0 0.0
    %92 = vmatprep.subr.mxu0 0.0
    %93 = vmatpush1.msra.mxu0 0.0
    %94 = vmatprep.subr.mxu0 0.0
    %95 = vmatpush1.msra.mxu0 0.0
    %96 = vmatprep.subr.mxu0 0.0
    %97 = vmatpush1.msra.mxu0 0.0
    %98 = vmatprep.subr.mxu0 0.0
    %99 = vmatpush1.msra.mxu0 0.0
    %100 = vmatprep.subr.mxu0 0.0
    %101 = vmatpush1.msra.mxu0 0.0
    %102 = vmatprep.subr.mxu0 0.0
    %103 = vmatpush1.msra.mxu0 0.0
    %104 = vmatprep.subr.mxu0 0.0
    %105 = vmatpush1.msra.mxu0 0.0
    %106 = vmatprep.subr.mxu0 0.0
    %107 = vmatpush1.msra.mxu0 0.0
    %108 = vmatprep.subr.mxu0 0.0
    %109 = vmatpush1.msra.mxu0 0.0
    %110 = vmatprep.subr.mxu0 0.0
    %111 = vmatpush1.msra.mxu0 0.0
    %112 = vmatprep.subr.mxu0 0.0
    %113 = vmatpush1.msra.mxu0 0.0
    %114 = vmatprep.subr.mxu0 0.0
    %115 = vmatpush1.msra.mxu0 0.0
    %116 = vmatprep.subr.mxu0 0.0
    %117 = vmatpush1.msra.mxu0 0.0
    %118 = vmatprep.mubr.f32.mxu0 0.0
    %119 = vmatmul.mubr.f32.gmra.mrb[0].mxu0 %v49
    %v120 = vpop.f32.mrb[0].mxu0
    %v121 = vadd.f32 0.0, %v120
    %v122 = vpop.f32.mrb[0].mxu0
    %123 = vmatprep.mubr.f32.mxu0 0.0
    %124 = vmatmul.mubr.f32.gmra.mrb[0].mxu0 %v52
    %v125 = vpop.f32.mrb[0].mxu0
    %v126 = vadd.f32 0.0, %v125
    %v127 = vpop.f32.mrb[0].mxu0
    %128 = vdwg.mxu0
    %v129 = vlaneseq
    %v130 = vshrl.u32 %v129, 7
    %v131 = vsub.s32 0, %v130
    %v132 = vrot.slane %v44, %v131
    %v133 = vmul.f32 %v121, %v132
    %v134 = vmul.f32 %v126, %v132
    %v135 = vsel %vm47, %v133, 0.0
    %136 = vadd.xlane.f32.xlu0 %v135
    %v137 = vpop.xlane.xlu0 %136
    %v138 = vsel %vm47, %v134, 0.0
    %139 = vadd.xlane.f32.xlu0 %v138
    %v140 = vpop.xlane.xlu0 %139
    %v142 = vsel %vm47, %v45, 0
    %v145 = vsel %vm47, %v121, 0
    %v148 = vsel %vm47, %v126, 0
    %150 = vmatprep.subr.mxu0 0.0
    %151 = vmatpush1.xpose.msra.mxu0 %v145
    %152 = vmatprep.subr.mxu0 0.0
    %153 = vmatpush1.xpose.msra.mxu0 %v148
    %154 = vmatprep.subr.mxu0 0.0
    %155 = vmatpush1.xpose.msra.mxu0 0.0
    %156 = vmatprep.subr.mxu0 0.0
    %157 = vmatpush1.xpose.msra.mxu0 0.0
    %158 = vmatprep.subr.mxu0 0.0
    %159 = vmatpush1.xpose.msra.mxu0 0.0
    %160 = vmatprep.subr.mxu0 0.0
    %161 = vmatpush1.xpose.msra.mxu0 0.0
    %162 = vmatprep.subr.mxu0 0.0
    %163 = vmatpush1.xpose.msra.mxu0 0.0
    %164 = vmatprep.subr.mxu0 0.0
    %165 = vmatpush1.xpose.msra.mxu0 0.0
    %166 = vmatprep.subr.mxu0 0.0
    %167 = vmatpush1.xpose.msra.mxu0 0.0
    %168 = vmatprep.subr.mxu0 0.0
    %169 = vmatpush1.xpose.msra.mxu0 0.0
    %170 = vmatprep.subr.mxu0 0.0
    %171 = vmatpush1.xpose.msra.mxu0 0.0
    %172 = vmatprep.subr.mxu0 0.0
    %173 = vmatpush1.xpose.msra.mxu0 0.0
    %174 = vmatprep.subr.mxu0 0.0
    %175 = vmatpush1.xpose.msra.mxu0 0.0
    %176 = vmatprep.subr.mxu0 0.0
    %177 = vmatpush1.xpose.msra.mxu0 0.0
    %178 = vmatprep.subr.mxu0 0.0
    %179 = vmatpush1.xpose.msra.mxu0 0.0
    %180 = vmatprep.subr.mxu0 0.0
    %181 = vmatpush1.xpose.msra.mxu0 0.0
    %182 = vmatprep.subr.mxu0 0.0
    %183 = vmatpush1.xpose.msra.mxu0 0.0
    %184 = vmatprep.subr.mxu0 0.0
    %185 = vmatpush1.xpose.msra.mxu0 0.0
    %186 = vmatprep.subr.mxu0 0.0
    %187 = vmatpush1.xpose.msra.mxu0 0.0
    %188 = vmatprep.subr.mxu0 0.0
    %189 = vmatpush1.xpose.msra.mxu0 0.0
    %190 = vmatprep.subr.mxu0 0.0
    %191 = vmatpush1.xpose.msra.mxu0 0.0
    %192 = vmatprep.subr.mxu0 0.0
    %193 = vmatpush1.xpose.msra.mxu0 0.0
    %194 = vmatprep.subr.mxu0 0.0
    %195 = vmatpush1.xpose.msra.mxu0 0.0
    %196 = vmatprep.subr.mxu0 0.0
    %197 = vmatpush1.xpose.msra.mxu0 0.0
    %198 = vmatprep.subr.mxu0 0.0
    %199 = vmatpush1.xpose.msra.mxu0 0.0
    %200 = vmatprep.subr.mxu0 0.0
    %201 = vmatpush1.xpose.msra.mxu0 0.0
    %202 = vmatprep.subr.mxu0 0.0
    %203 = vmatpush1.xpose.msra.mxu0 0.0
    %204 = vmatprep.subr.mxu0 0.0
    %205 = vmatpush1.xpose.msra.mxu0 0.0
    %206 = vmatprep.subr.mxu0 0.0
    %207 = vmatpush1.xpose.msra.mxu0 0.0
    %208 = vmatprep.subr.mxu0 0.0
    %209 = vmatpush1.xpose.msra.mxu0 0.0
    %210 = vmatprep.subr.mxu0 0.0
    %211 = vmatpush1.xpose.msra.mxu0 0.0
    %212 = vmatprep.subr.mxu0 0.0
    %213 = vmatpush1.xpose.msra.mxu0 0.0
    %214 = vmatprep.mubr.f32.mxu0 0.0
    %215 = vmatmul.mubr.f32.gmra.mrb[0].mxu0 %v142
    %v216 = vpop.f32.mrb[0].mxu0
    %v217 = vadd.f32 0.0, %v216
    %v218 = vpop.f32.mrb[0].mxu0
    %219 = vdwg.mxu0
    %v220 = vlaneseq
    %v221 = vshrl.u32 %v220, 7
    %v222 = vsub.s32 0, %v221
    %v223 = vrot.slane %v217, %v222
    %v224 = vadd.f32 %v137, %v223
    %v225 = vadd.f32 %v140, %v223
    %vm226 = vcmp.gt.f32.partialorder %v224, 0.0
    %vm227 = vcmp.gt.f32.partialorder %v225, 0.0
    %v228 = vmul.f32 %v224, 0.2
    %v229 = vmul.f32 %v225, 0.2
    %v230 = vsel %vm226, %v224, %v228
    %v231 = vsel %vm227, %v225, %v229
    %v232 = vadd.f32 %v230, %v39
    %v233 = vadd.f32 %v231, %v40
    %vm234 = vcmask 130048
    %v235 = vsel %vm234, %v232, -inf
    %236 = vmax.xlane.f32.xlu0 %v235
    %v237 = vpop.xlane.xlu0 %236
    %v238 = vsel %vm234, %v233, -inf
    %239 = vmax.xlane.f32.xlu0 %v238
    %v240 = vpop.xlane.xlu0 %239
    %v241 = vsub.f32 %v232, %v237
    %v242 = vsub.f32 %v233, %v240
    %v243 = vmul.f32 %v241, 1.442695
    %v244 = vpow.pop %v243
    %v245 = vmul.f32 %v242, 1.442695
    %v246 = vpow.pop %v245
    %v247 = vsel %vm234, %v244, 0.0
    %248 = vadd.xlane.f32.xlu0 %v247
    %v249 = vpop.xlane.xlu0 %248
    %v250 = vsel %vm234, %v246, 0.0
    %251 = vadd.xlane.f32.xlu0 %v250
    %v252 = vpop.xlane.xlu0 %251
    %v253 = vrcp.pop %v249
    %v254 = vrcp.pop %v252
    %v256 = vsel %vm234, %v244, 0
    %v259 = vsel %vm234, %v246, 0
    %261 = vmatprep.subr.mxu0 0.0
    %262 = vmatpush1.msra.mxu0 %v121
    %263 = vmatprep.subr.mxu0 0.0
    %264 = vmatpush1.msra.mxu0 %v126
    %265 = vmatprep.subr.mxu0 0.0
    %266 = vmatpush1.msra.mxu0 0.0
    %267 = vmatprep.subr.mxu0 0.0
    %268 = vmatpush1.msra.mxu0 0.0
    %269 = vmatprep.subr.mxu0 0.0
    %270 = vmatpush1.msra.mxu0 0.0
    %271 = vmatprep.subr.mxu0 0.0
    %272 = vmatpush1.msra.mxu0 0.0
    %273 = vmatprep.subr.mxu0 0.0
    %274 = vmatpush1.msra.mxu0 0.0
    %275 = vmatprep.subr.mxu0 0.0
    %276 = vmatpush1.msra.mxu0 0.0
    %277 = vmatprep.subr.mxu0 0.0
    %278 = vmatpush1.msra.mxu0 0.0
    %279 = vmatprep.subr.mxu0 0.0
    %280 = vmatpush1.msra.mxu0 0.0
    %281 = vmatprep.subr.mxu0 0.0
    %282 = vmatpush1.msra.mxu0 0.0
    %283 = vmatprep.subr.mxu0 0.0
    %284 = vmatpush1.msra.mxu0 0.0
    %285 = vmatprep.subr.mxu0 0.0
    %286 = vmatpush1.msra.mxu0 0.0
    %287 = vmatprep.subr.mxu0 0.0
    %288 = vmatpush1.msra.mxu0 0.0
    %289 = vmatprep.subr.mxu0 0.0
    %290 = vmatpush1.msra.mxu0 0.0
    %291 = vmatprep.subr.mxu0 0.0
    %292 = vmatpush1.msra.mxu0 0.0
    %293 = vmatprep.subr.mxu0 0.0
    %294 = vmatpush1.msra.mxu0 0.0
    %295 = vmatprep.subr.mxu0 0.0
    %296 = vmatpush1.msra.mxu0 0.0
    %297 = vmatprep.subr.mxu0 0.0
    %298 = vmatpush1.msra.mxu0 0.0
    %299 = vmatprep.subr.mxu0 0.0
    %300 = vmatpush1.msra.mxu0 0.0
    %301 = vmatprep.subr.mxu0 0.0
    %302 = vmatpush1.msra.mxu0 0.0
    %303 = vmatprep.subr.mxu0 0.0
    %304 = vmatpush1.msra.mxu0 0.0
    %305 = vmatprep.subr.mxu0 0.0
    %306 = vmatpush1.msra.mxu0 0.0
    %307 = vmatprep.subr.mxu0 0.0
    %308 = vmatpush1.msra.mxu0 0.0
    %309 = vmatprep.subr.mxu0 0.0
    %310 = vmatpush1.msra.mxu0 0.0
    %311 = vmatprep.subr.mxu0 0.0
    %312 = vmatpush1.msra.mxu0 0.0
    %313 = vmatprep.subr.mxu0 0.0
    %314 = vmatpush1.msra.mxu0 0.0
    %315 = vmatprep.subr.mxu0 0.0
    %316 = vmatpush1.msra.mxu0 0.0
    %317 = vmatprep.subr.mxu0 0.0
    %318 = vmatpush1.msra.mxu0 0.0
    %319 = vmatprep.subr.mxu0 0.0
    %320 = vmatpush1.msra.mxu0 0.0
    %321 = vmatprep.subr.mxu0 0.0
    %322 = vmatpush1.msra.mxu0 0.0
    %323 = vmatprep.subr.mxu0 0.0
    %324 = vmatpush1.msra.mxu0 0.0
    %325 = vmatprep.mubr.f32.mxu0 0.0
    %326 = vmatmul.mubr.f32.gmra.mrb[0].mxu0 %v256
    %v327 = vpop.f32.mrb[0].mxu0
    %v328 = vadd.f32 0.0, %v327
    %v329 = vpop.f32.mrb[0].mxu0
    %330 = vmatprep.mubr.f32.mxu0 0.0
    %331 = vmatmul.mubr.f32.gmra.mrb[0].mxu0 %v259
    %v332 = vpop.f32.mrb[0].mxu0
    %v333 = vadd.f32 0.0, %v332
    %v334 = vpop.f32.mrb[0].mxu0
    %335 = vdwg.mxu0
    %v336 = vmul.f32 %v328, %v253
    %v337 = vmul.f32 %v333, %v254
    %v338 = vlaneseq
    %v339 = vshrl.u32 %v338, 7
    %v340 = vsub.s32 1, %v339
    %v341 = vrot.slane %v44, %v340
    %343 = vrot.lane.b32.xlu0 %v341, 8
    %v344 = vpop.permute.xlu0 %343
    %v346 = vmul.f32 %v121, %v344
    %v347 = vmul.f32 %v126, %v344
    %350 = vrot.lane.b32.xlu0 %v346, 120
    %v351 = vpop.permute.xlu0 %350
    %352 = vrot.lane.b32.xlu0 %v347, 120
    %v353 = vpop.permute.xlu0 %352
    %v356 = vsel %vm47, %v351, 0.0
    %357 = vadd.xlane.f32.xlu0 %v356
    %v358 = vpop.xlane.xlu0 %357
    %v359 = vsel %vm47, %v353, 0.0
    %360 = vadd.xlane.f32.xlu0 %v359
    %v361 = vpop.xlane.xlu0 %360
    %v362 = vrot.slane %v45, 1
    %363 = vrot.lane.b32.xlu0 %v121, 120
    %v364 = vpop.permute.xlu0 %363
    %365 = vrot.lane.b32.xlu0 %v126, 120
    %v366 = vpop.permute.xlu0 %365
    %v367 = vsel %vm47, %v362, 0
    %v369 = vsel %vm47, %v364, 0
    %v371 = vsel %vm47, %v366, 0
    %373 = vmatprep.subr.mxu0 0.0
    %374 = vmatpush1.xpose.msra.mxu0 %v369
    %375 = vmatprep.subr.mxu0 0.0
    %376 = vmatpush1.xpose.msra.mxu0 %v371
    %377 = vmatprep.subr.mxu0 0.0
    %378 = vmatpush1.xpose.msra.mxu0 0.0
    %379 = vmatprep.subr.mxu0 0.0
    %380 = vmatpush1.xpose.msra.mxu0 0.0
    %381 = vmatprep.subr.mxu0 0.0
    %382 = vmatpush1.xpose.msra.mxu0 0.0
    %383 = vmatprep.subr.mxu0 0.0
    %384 = vmatpush1.xpose.msra.mxu0 0.0
    %385 = vmatprep.subr.mxu0 0.0
    %386 = vmatpush1.xpose.msra.mxu0 0.0
    %387 = vmatprep.subr.mxu0 0.0
    %388 = vmatpush1.xpose.msra.mxu0 0.0
    %389 = vmatprep.subr.mxu0 0.0
    %390 = vmatpush1.xpose.msra.mxu0 0.0
    %391 = vmatprep.subr.mxu0 0.0
    %392 = vmatpush1.xpose.msra.mxu0 0.0
    %393 = vmatprep.subr.mxu0 0.0
    %394 = vmatpush1.xpose.msra.mxu0 0.0
    %395 = vmatprep.subr.mxu0 0.0
    %396 = vmatpush1.xpose.msra.mxu0 0.0
    %397 = vmatprep.subr.mxu0 0.0
    %398 = vmatpush1.xpose.msra.mxu0 0.0
    %399 = vmatprep.subr.mxu0 0.0
    %400 = vmatpush1.xpose.msra.mxu0 0.0
    %401 = vmatprep.subr.mxu0 0.0
    %402 = vmatpush1.xpose.msra.mxu0 0.0
    %403 = vmatprep.subr.mxu0 0.0
    %404 = vmatpush1.xpose.msra.mxu0 0.0
    %405 = vmatprep.subr.mxu0 0.0
    %406 = vmatpush1.xpose.msra.mxu0 0.0
    %407 = vmatprep.subr.mxu0 0.0
    %408 = vmatpush1.xpose.msra.mxu0 0.0
    %409 = vmatprep.subr.mxu0 0.0
    %410 = vmatpush1.xpose.msra.mxu0 0.0
    %411 = vmatprep.subr.mxu0 0.0
    %412 = vmatpush1.xpose.msra.mxu0 0.0
    %413 = vmatprep.subr.mxu0 0.0
    %414 = vmatpush1.xpose.msra.mxu0 0.0
    %415 = vmatprep.subr.mxu0 0.0
    %416 = vmatpush1.xpose.msra.mxu0 0.0
    %417 = vmatprep.subr.mxu0 0.0
    %418 = vmatpush1.xpose.msra.mxu0 0.0
    %419 = vmatprep.subr.mxu0 0.0
    %420 = vmatpush1.xpose.msra.mxu0 0.0
    %421 = vmatprep.subr.mxu0 0.0
    %422 = vmatpush1.xpose.msra.mxu0 0.0
    %423 = vmatprep.subr.mxu0 0.0
    %424 = vmatpush1.xpose.msra.mxu0 0.0
    %425 = vmatprep.subr.mxu0 0.0
    %426 = vmatpush1.xpose.msra.mxu0 0.0
    %427 = vmatprep.subr.mxu0 0.0
    %428 = vmatpush1.xpose.msra.mxu0 0.0
    %429 = vmatprep.subr.mxu0 0.0
    %430 = vmatpush1.xpose.msra.mxu0 0.0
    %431 = vmatprep.subr.mxu0 0.0
    %432 = vmatpush1.xpose.msra.mxu0 0.0
    %433 = vmatprep.subr.mxu0 0.0
    %434 = vmatpush1.xpose.msra.mxu0 0.0
    %435 = vmatprep.subr.mxu0 0.0
    %436 = vmatpush1.xpose.msra.mxu0 0.0
    %437 = vmatprep.mubr.f32.mxu0 0.0
    %438 = vmatmul.mubr.f32.gmra.mrb[0].mxu0 %v367
    %v439 = vpop.f32.mrb[0].mxu0
    %v440 = vadd.f32 0.0, %v439
    %v441 = vpop.f32.mrb[0].mxu0
    %442 = vdwg.mxu0
    %v443 = vlaneseq
    %v444 = vshrl.u32 %v443, 7
    %v445 = vsub.s32 0, %v444
    %v446 = vrot.slane %v440, %v445
    %v447 = vadd.f32 %v358, %v446
    %v448 = vadd.f32 %v361, %v446
    %vm449 = vcmp.gt.f32.partialorder %v447, 0.0
    %vm450 = vcmp.gt.f32.partialorder %v448, 0.0
    %v451 = vmul.f32 %v447, 0.2
    %v452 = vmul.f32 %v448, 0.2
    %v453 = vsel %vm449, %v447, %v451
    %v454 = vsel %vm450, %v448, %v452
    %v455 = vadd.f32 %v453, %v39
    %v456 = vadd.f32 %v454, %v40
    %v457 = vsel %vm234, %v455, -inf
    %458 = vmax.xlane.f32.xlu0 %v457
    %v459 = vpop.xlane.xlu0 %458
    %v460 = vsel %vm234, %v456, -inf
    %461 = vmax.xlane.f32.xlu0 %v460
    %v462 = vpop.xlane.xlu0 %461
    %v463 = vsub.f32 %v455, %v459
    %v464 = vsub.f32 %v456, %v462
    %v465 = vmul.f32 %v463, 1.442695
    %v466 = vpow.pop %v465
    %v467 = vmul.f32 %v464, 1.442695
    %v468 = vpow.pop %v467
    %v469 = vsel %vm234, %v466, 0.0
    %470 = vadd.xlane.f32.xlu0 %v469
    %v471 = vpop.xlane.xlu0 %470
    %v472 = vsel %vm234, %v468, 0.0
    %473 = vadd.xlane.f32.xlu0 %v472
    %v474 = vpop.xlane.xlu0 %473
    %v475 = vrcp.pop %v471
    %v476 = vrcp.pop %v474
    %v480 = vsel %vm234, %v466, 0
    %v483 = vsel %vm234, %v468, 0
    %485 = vmatprep.subr.mxu0 0.0
    %486 = vmatpush1.msra.mxu0 %v364
    %487 = vmatprep.subr.mxu0 0.0
    %488 = vmatpush1.msra.mxu0 %v366
    %489 = vmatprep.subr.mxu0 0.0
    %490 = vmatpush1.msra.mxu0 0.0
    %491 = vmatprep.subr.mxu0 0.0
    %492 = vmatpush1.msra.mxu0 0.0
    %493 = vmatprep.subr.mxu0 0.0
    %494 = vmatpush1.msra.mxu0 0.0
    %495 = vmatprep.subr.mxu0 0.0
    %496 = vmatpush1.msra.mxu0 0.0
    %497 = vmatprep.subr.mxu0 0.0
    %498 = vmatpush1.msra.mxu0 0.0
    %499 = vmatprep.subr.mxu0 0.0
    %500 = vmatpush1.msra.mxu0 0.0
    %501 = vmatprep.subr.mxu0 0.0
    %502 = vmatpush1.msra.mxu0 0.0
    %503 = vmatprep.subr.mxu0 0.0
    %504 = vmatpush1.msra.mxu0 0.0
    %505 = vmatprep.subr.mxu0 0.0
    %506 = vmatpush1.msra.mxu0 0.0
    %507 = vmatprep.subr.mxu0 0.0
    %508 = vmatpush1.msra.mxu0 0.0
    %509 = vmatprep.subr.mxu0 0.0
    %510 = vmatpush1.msra.mxu0 0.0
    %511 = vmatprep.subr.mxu0 0.0
    %512 = vmatpush1.msra.mxu0 0.0
    %513 = vmatprep.subr.mxu0 0.0
    %514 = vmatpush1.msra.mxu0 0.0
    %515 = vmatprep.subr.mxu0 0.0
    %516 = vmatpush1.msra.mxu0 0.0
    %517 = vmatprep.subr.mxu0 0.0
    %518 = vmatpush1.msra.mxu0 0.0
    %519 = vmatprep.subr.mxu0 0.0
    %520 = vmatpush1.msra.mxu0 0.0
    %521 = vmatprep.subr.mxu0 0.0
    %522 = vmatpush1.msra.mxu0 0.0
    %523 = vmatprep.subr.mxu0 0.0
    %524 = vmatpush1.msra.mxu0 0.0
    %525 = vmatprep.subr.mxu0 0.0
    %526 = vmatpush1.msra.mxu0 0.0
    %527 = vmatprep.subr.mxu0 0.0
    %528 = vmatpush1.msra.mxu0 0.0
    %529 = vmatprep.subr.mxu0 0.0
    %530 = vmatpush1.msra.mxu0 0.0
    %531 = vmatprep.subr.mxu0 0.0
    %532 = vmatpush1.msra.mxu0 0.0
    %533 = vmatprep.subr.mxu0 0.0
    %534 = vmatpush1.msra.mxu0 0.0
    %535 = vmatprep.subr.mxu0 0.0
    %536 = vmatpush1.msra.mxu0 0.0
    %537 = vmatprep.subr.mxu0 0.0
    %538 = vmatpush1.msra.mxu0 0.0
    %539 = vmatprep.subr.mxu0 0.0
    %540 = vmatpush1.msra.mxu0 0.0
    %541 = vmatprep.subr.mxu0 0.0
    %542 = vmatpush1.msra.mxu0 0.0
    %543 = vmatprep.subr.mxu0 0.0
    %544 = vmatpush1.msra.mxu0 0.0
    %545 = vmatprep.subr.mxu0 0.0
    %546 = vmatpush1.msra.mxu0 0.0
    %547 = vmatprep.subr.mxu0 0.0
    %548 = vmatpush1.msra.mxu0 0.0
    %549 = vmatprep.mubr.f32.mxu0 0.0
    %550 = vmatmul.mubr.f32.gmra.mrb[0].mxu0 %v480
    %v551 = vpop.f32.mrb[0].mxu0
    %v552 = vadd.f32 0.0, %v551
    %v553 = vpop.f32.mrb[0].mxu0
    %554 = vmatprep.mubr.f32.mxu0 0.0
    %555 = vmatmul.mubr.f32.gmra.mrb[0].mxu0 %v483
    %v556 = vpop.f32.mrb[0].mxu0
    %v557 = vadd.f32 0.0, %v556
    %v558 = vpop.f32.mrb[0].mxu0
    %559 = vdwg.mxu0
    %v560 = vmul.f32 %v552, %v475
    %v561 = vmul.f32 %v557, %v476
    %564 = vrot.lane.b32.xlu0 %v560, 8
    %v565 = vpop.permute.xlu0 %564
    %566 = vrot.lane.b32.xlu0 %v561, 8
    %v567 = vpop.permute.xlu0 %566
    %v570 = vsel %vm47, %v336, %v565
    %v571 = vsel %vm47, %v337, %v567
    %v572 = vlaneseq
    %v573 = vshrl.u32 %v572, 7
    %v574 = vsub.s32 0, %v573
    %v575 = vrot.slane %v46, %v574
    %v576 = vadd.f32 %v570, %v575
    %v577 = vadd.f32 %v571, %v575
    %v578 = vmax.f32 %v576, 0.0
    %v579 = vmax.f32 %v577, 0.0
    %v580 = vld [vmem:[#allocation2 + $0x20] sm:$0x1]
    %v581 = vlaneseq
    %v582 = vshrl.u32 %v581, 7
    %v583 = vsub.s32 0, %v582
    %v584 = vrot.slane %v580, %v583
    %v585 = vmul.f32 %v578, %v584
    %v586 = vmul.f32 %v579, %v584
    %v587 = vld [vmem:[#allocation2 + $0x28] sm:$0x1]
    %v588 = vlaneseq
    %v589 = vshrl.u32 %v588, 7
    %v590 = vsub.s32 0, %v589
    %v591 = vrot.slane %v587, %v590
    %v592 = vadd.f32 %v585, %v591
    %v593 = vadd.f32 %v586, %v591
    %v594 = vld [vmem:[#allocation2 + $0x30] sm:$0xff]
    %v595 = vld [vmem:[#allocation2 + $0x38] sm:$0xff]
    %v596 = vld [vmem:[#allocation2 + $0x40] sm:$0x3]
    %v597 = vld [vmem:[#allocation2 + $0x48] sm:$0x3]
    %v598 = vld [vmem:[#allocation2 + $0x50] sm:$0x1]
    %v600 = vsel %vm234, %v592, 0
    %v603 = vsel %vm234, %v593, 0
    %605 = vmatprep.subr.mxu0 0.0
    %606 = vmatpush1.msra.mxu0 %v594
    %607 = vmatprep.subr.mxu0 0.0
    %608 = vmatpush1.msra.mxu0 %v595
    %609 = vmatprep.subr.mxu0 0.0
    %610 = vmatpush1.msra.mxu0 0.0
    %611 = vmatprep.subr.mxu0 0.0
    %612 = vmatpush1.msra.mxu0 0.0
    %613 = vmatprep.subr.mxu0 0.0
    %614 = vmatpush1.msra.mxu0 0.0
    %615 = vmatprep.subr.mxu0 0.0
    %616 = vmatpush1.msra.mxu0 0.0
    %617 = vmatprep.subr.mxu0 0.0
    %618 = vmatpush1.msra.mxu0 0.0
    %619 = vmatprep.subr.mxu0 0.0
    %620 = vmatpush1.msra.mxu0 0.0
    %621 = vmatprep.subr.mxu0 0.0
    %622 = vmatpush1.msra.mxu0 0.0
    %623 = vmatprep.subr.mxu0 0.0
    %624 = vmatpush1.msra.mxu0 0.0
    %625 = vmatprep.subr.mxu0 0.0
    %626 = vmatpush1.msra.mxu0 0.0
    %627 = vmatprep.subr.mxu0 0.0
    %628 = vmatpush1.msra.mxu0 0.0
    %629 = vmatprep.subr.mxu0 0.0
    %630 = vmatpush1.msra.mxu0 0.0
    %631 = vmatprep.subr.mxu0 0.0
    %632 = vmatpush1.msra.mxu0 0.0
    %633 = vmatprep.subr.mxu0 0.0
    %634 = vmatpush1.msra.mxu0 0.0
    %635 = vmatprep.subr.mxu0 0.0
    %636 = vmatpush1.msra.mxu0 0.0
    %637 = vmatprep.subr.mxu0 0.0
    %638 = vmatpush1.msra.mxu0 0.0
    %639 = vmatprep.subr.mxu0 0.0
    %640 = vmatpush1.msra.mxu0 0.0
    %641 = vmatprep.subr.mxu0 0.0
    %642 = vmatpush1.msra.mxu0 0.0
    %643 = vmatprep.subr.mxu0 0.0
    %644 = vmatpush1.msra.mxu0 0.0
    %645 = vmatprep.subr.mxu0 0.0
    %646 = vmatpush1.msra.mxu0 0.0
    %647 = vmatprep.subr.mxu0 0.0
    %648 = vmatpush1.msra.mxu0 0.0
    %649 = vmatprep.subr.mxu0 0.0
    %650 = vmatpush1.msra.mxu0 0.0
    %651 = vmatprep.subr.mxu0 0.0
    %652 = vmatpush1.msra.mxu0 0.0
    %653 = vmatprep.subr.mxu0 0.0
    %654 = vmatpush1.msra.mxu0 0.0
    %655 = vmatprep.subr.mxu0 0.0
    %656 = vmatpush1.msra.mxu0 0.0
    %657 = vmatprep.subr.mxu0 0.0
    %658 = vmatpush1.msra.mxu0 0.0
    %659 = vmatprep.subr.mxu0 0.0
    %660 = vmatpush1.msra.mxu0 0.0
    %661 = vmatprep.subr.mxu0 0.0
    %662 = vmatpush1.msra.mxu0 0.0
    %663 = vmatprep.subr.mxu0 0.0
    %664 = vmatpush1.msra.mxu0 0.0
    %665 = vmatprep.subr.mxu0 0.0
    %666 = vmatpush1.msra.mxu0 0.0
    %667 = vmatprep.subr.mxu0 0.0
    %668 = vmatpush1.msra.mxu0 0.0
    %669 = vmatprep.mubr.f32.mxu0 0.0
    %670 = vmatmul.mubr.f32.gmra.mrb[0].mxu0 %v600
    %v671 = vpop.f32.mrb[0].mxu0
    %v672 = vadd.f32 0.0, %v671
    %v673 = vpop.f32.mrb[0].mxu0
    %674 = vmatprep.mubr.f32.mxu0 0.0
    %675 = vmatmul.mubr.f32.gmra.mrb[0].mxu0 %v603
    %v676 = vpop.f32.mrb[0].mxu0
    %v677 = vadd.f32 0.0, %v676
    %v678 = vpop.f32.mrb[0].mxu0
    %679 = vdwg.mxu0
    %v680 = vlaneseq
    %v681 = vshrl.u32 %v680, 7
    %v682 = vsub.s32 0, %v681
    %v683 = vrot.slane %v596, %v682
    %v684 = vmul.f32 %v672, %v683
    %v685 = vmul.f32 %v677, %v683
    %v686 = vsel %vm47, %v684, 0.0
    %687 = vadd.xlane.f32.xlu0 %v686
    %v688 = vpop.xlane.xlu0 %687
    %v689 = vsel %vm47, %v685, 0.0
    %690 = vadd.xlane.f32.xlu0 %v689
    %v691 = vpop.xlane.xlu0 %690
    %v693 = vsel %vm47, %v597, 0
    %v696 = vsel %vm47, %v672, 0
    %v699 = vsel %vm47, %v677, 0
    %701 = vmatprep.subr.mxu0 0.0
    %702 = vmatpush1.xpose.msra.mxu0 %v696
    %703 = vmatprep.subr.mxu0 0.0
    %704 = vmatpush1.xpose.msra.mxu0 %v699
    %705 = vmatprep.subr.mxu0 0.0
    %706 = vmatpush1.xpose.msra.mxu0 0.0
    %707 = vmatprep.subr.mxu0 0.0
    %708 = vmatpush1.xpose.msra.mxu0 0.0
    %709 = vmatprep.subr.mxu0 0.0
    %710 = vmatpush1.xpose.msra.mxu0 0.0
    %711 = vmatprep.subr.mxu0 0.0
    %712 = vmatpush1.xpose.msra.mxu0 0.0
    %713 = vmatprep.subr.mxu0 0.0
    %714 = vmatpush1.xpose.msra.mxu0 0.0
    %715 = vmatprep.subr.mxu0 0.0
    %716 = vmatpush1.xpose.msra.mxu0 0.0
    %717 = vmatprep.subr.mxu0 0.0
    %718 = vmatpush1.xpose.msra.mxu0 0.0
    %719 = vmatprep.subr.mxu0 0.0
    %720 = vmatpush1.xpose.msra.mxu0 0.0
    %721 = vmatprep.subr.mxu0 0.0
    %722 = vmatpush1.xpose.msra.mxu0 0.0
    %723 = vmatprep.subr.mxu0 0.0
    %724 = vmatpush1.xpose.msra.mxu0 0.0
    %725 = vmatprep.subr.mxu0 0.0
    %726 = vmatpush1.xpose.msra.mxu0 0.0
    %727 = vmatprep.subr.mxu0 0.0
    %728 = vmatpush1.xpose.msra.mxu0 0.0
    %729 = vmatprep.subr.mxu0 0.0
    %730 = vmatpush1.xpose.msra.mxu0 0.0
    %731 = vmatprep.subr.mxu0 0.0
    %732 = vmatpush1.xpose.msra.mxu0 0.0
    %733 = vmatprep.subr.mxu0 0.0
    %734 = vmatpush1.xpose.msra.mxu0 0.0
    %735 = vmatprep.subr.mxu0 0.0
    %736 = vmatpush1.xpose.msra.mxu0 0.0
    %737 = vmatprep.subr.mxu0 0.0
    %738 = vmatpush1.xpose.msra.mxu0 0.0
    %739 = vmatprep.subr.mxu0 0.0
    %740 = vmatpush1.xpose.msra.mxu0 0.0
    %741 = vmatprep.subr.mxu0 0.0
    %742 = vmatpush1.xpose.msra.mxu0 0.0
    %743 = vmatprep.subr.mxu0 0.0
    %744 = vmatpush1.xpose.msra.mxu0 0.0
    %745 = vmatprep.subr.mxu0 0.0
    %746 = vmatpush1.xpose.msra.mxu0 0.0
    %747 = vmatprep.subr.mxu0 0.0
    %748 = vmatpush1.xpose.msra.mxu0 0.0
    %749 = vmatprep.subr.mxu0 0.0
    %750 = vmatpush1.xpose.msra.mxu0 0.0
    %751 = vmatprep.subr.mxu0 0.0
    %752 = vmatpush1.xpose.msra.mxu0 0.0
    %753 = vmatprep.subr.mxu0 0.0
    %754 = vmatpush1.xpose.msra.mxu0 0.0
    %755 = vmatprep.subr.mxu0 0.0
    %756 = vmatpush1.xpose.msra.mxu0 0.0
    %757 = vmatprep.subr.mxu0 0.0
    %758 = vmatpush1.xpose.msra.mxu0 0.0
    %759 = vmatprep.subr.mxu0 0.0
    %760 = vmatpush1.xpose.msra.mxu0 0.0
    %761 = vmatprep.subr.mxu0 0.0
    %762 = vmatpush1.xpose.msra.mxu0 0.0
    %763 = vmatprep.subr.mxu0 0.0
    %764 = vmatpush1.xpose.msra.mxu0 0.0
    %765 = vmatprep.mubr.f32.mxu0 0.0
    %766 = vmatmul.mubr.f32.gmra.mrb[0].mxu0 %v693
    %v767 = vpop.f32.mrb[0].mxu0
    %v768 = vadd.f32 0.0, %v767
    %v769 = vpop.f32.mrb[0].mxu0
    %770 = vdwg.mxu0
    %v771 = vlaneseq
    %v772 = vshrl.u32 %v771, 7
    %v773 = vsub.s32 0, %v772
    %v774 = vrot.slane %v768, %v773
    %v775 = vadd.f32 %v688, %v774
    %v776 = vadd.f32 %v691, %v774
    %vm777 = vcmp.gt.f32.partialorder %v775, 0.0
    %vm778 = vcmp.gt.f32.partialorder %v776, 0.0
    %v779 = vmul.f32 %v775, 0.2
    %v780 = vmul.f32 %v776, 0.2
    %v781 = vsel %vm777, %v775, %v779
    %v782 = vsel %vm778, %v776, %v780
    %v783 = vadd.f32 %v781, %v39
    %v784 = vadd.f32 %v782, %v40
    %v785 = vsel %vm234, %v783, -inf
    %786 = vmax.xlane.f32.xlu0 %v785
    %v787 = vpop.xlane.xlu0 %786
    %v788 = vsel %vm234, %v784, -inf
    %789 = vmax.xlane.f32.xlu0 %v788
    %v790 = vpop.xlane.xlu0 %789
    %v791 = vsub.f32 %v783, %v787
    %v792 = vsub.f32 %v784, %v790
    %v793 = vmul.f32 %v791, 1.442695
    %v794 = vpow.pop %v793
    %v795 = vmul.f32 %v792, 1.442695
    %v796 = vpow.pop %v795
    %v797 = vsel %vm234, %v794, 0.0
    %798 = vadd.xlane.f32.xlu0 %v797
    %v799 = vpop.xlane.xlu0 %798
    %v800 = vsel %vm234, %v796, 0.0
    %801 = vadd.xlane.f32.xlu0 %v800
    %v802 = vpop.xlane.xlu0 %801
    %v803 = vrcp.pop %v799
    %v804 = vrcp.pop %v802
    %v806 = vsel %vm234, %v794, 0
    %v809 = vsel %vm234, %v796, 0
    %811 = vmatprep.subr.mxu0 0.0
    %812 = vmatpush1.msra.mxu0 %v672
    %813 = vmatprep.subr.mxu0 0.0
    %814 = vmatpush1.msra.mxu0 %v677
    %815 = vmatprep.subr.mxu0 0.0
    %816 = vmatpush1.msra.mxu0 0.0
    %817 = vmatprep.subr.mxu0 0.0
    %818 = vmatpush1.msra.mxu0 0.0
    %819 = vmatprep.subr.mxu0 0.0
    %820 = vmatpush1.msra.mxu0 0.0
    %821 = vmatprep.subr.mxu0 0.0
    %822 = vmatpush1.msra.mxu0 0.0
    %823 = vmatprep.subr.mxu0 0.0
    %824 = vmatpush1.msra.mxu0 0.0
    %825 = vmatprep.subr.mxu0 0.0
    %826 = vmatpush1.msra.mxu0 0.0
    %827 = vmatprep.subr.mxu0 0.0
    %828 = vmatpush1.msra.mxu0 0.0
    %829 = vmatprep.subr.mxu0 0.0
    %830 = vmatpush1.msra.mxu0 0.0
    %831 = vmatprep.subr.mxu0 0.0
    %832 = vmatpush1.msra.mxu0 0.0
    %833 = vmatprep.subr.mxu0 0.0
    %834 = vmatpush1.msra.mxu0 0.0
    %835 = vmatprep.subr.mxu0 0.0
    %836 = vmatpush1.msra.mxu0 0.0
    %837 = vmatprep.subr.mxu0 0.0
    %838 = vmatpush1.msra.mxu0 0.0
    %839 = vmatprep.subr.mxu0 0.0
    %840 = vmatpush1.msra.mxu0 0.0
    %841 = vmatprep.subr.mxu0 0.0
    %842 = vmatpush1.msra.mxu0 0.0
    %843 = vmatprep.subr.mxu0 0.0
    %844 = vmatpush1.msra.mxu0 0.0
    %845 = vmatprep.subr.mxu0 0.0
    %846 = vmatpush1.msra.mxu0 0.0
    %847 = vmatprep.subr.mxu0 0.0
    %848 = vmatpush1.msra.mxu0 0.0
    %849 = vmatprep.subr.mxu0 0.0
    %850 = vmatpush1.msra.mxu0 0.0
    %851 = vmatprep.subr.mxu0 0.0
    %852 = vmatpush1.msra.mxu0 0.0
    %853 = vmatprep.subr.mxu0 0.0
    %854 = vmatpush1.msra.mxu0 0.0
    %855 = vmatprep.subr.mxu0 0.0
    %856 = vmatpush1.msra.mxu0 0.0
    %857 = vmatprep.subr.mxu0 0.0
    %858 = vmatpush1.msra.mxu0 0.0
    %859 = vmatprep.subr.mxu0 0.0
    %860 = vmatpush1.msra.mxu0 0.0
    %861 = vmatprep.subr.mxu0 0.0
    %862 = vmatpush1.msra.mxu0 0.0
    %863 = vmatprep.subr.mxu0 0.0
    %864 = vmatpush1.msra.mxu0 0.0
    %865 = vmatprep.subr.mxu0 0.0
    %866 = vmatpush1.msra.mxu0 0.0
    %867 = vmatprep.subr.mxu0 0.0
    %868 = vmatpush1.msra.mxu0 0.0
    %869 = vmatprep.subr.mxu0 0.0
    %870 = vmatpush1.msra.mxu0 0.0
    %871 = vmatprep.subr.mxu0 0.0
    %872 = vmatpush1.msra.mxu0 0.0
    %873 = vmatprep.subr.mxu0 0.0
    %874 = vmatpush1.msra.mxu0 0.0
    %875 = vmatprep.mubr.f32.mxu0 0.0
    %876 = vmatmul.mubr.f32.gmra.mrb[0].mxu0 %v806
    %v877 = vpop.f32.mrb[0].mxu0
    %v878 = vadd.f32 0.0, %v877
    %v879 = vpop.f32.mrb[0].mxu0
    %880 = vmatprep.mubr.f32.mxu0 0.0
    %881 = vmatmul.mubr.f32.gmra.mrb[0].mxu0 %v809
    %v882 = vpop.f32.mrb[0].mxu0
    %v883 = vadd.f32 0.0, %v882
    %v884 = vpop.f32.mrb[0].mxu0
    %885 = vdwg.mxu0
    %v886 = vmul.f32 %v878, %v803
    %v887 = vmul.f32 %v883, %v804
    %v888 = vlaneseq
    %v889 = vshrl.u32 %v888, 7
    %v890 = vsub.s32 1, %v889
    %v891 = vrot.slane %v596, %v890
    %893 = vrot.lane.b32.xlu0 %v891, 8
    %v894 = vpop.permute.xlu0 %893
    %v896 = vmul.f32 %v672, %v894
    %v897 = vmul.f32 %v677, %v894
    %900 = vrot.lane.b32.xlu0 %v896, 120
    %v901 = vpop.permute.xlu0 %900
    %902 = vrot.lane.b32.xlu0 %v897, 120
    %v903 = vpop.permute.xlu0 %902
    %v906 = vsel %vm47, %v901, 0.0
    %907 = vadd.xlane.f32.xlu0 %v906
    %v908 = vpop.xlane.xlu0 %907
    %v909 = vsel %vm47, %v903, 0.0
    %910 = vadd.xlane.f32.xlu0 %v909
    %v911 = vpop.xlane.xlu0 %910
    %v912 = vrot.slane %v597, 1
    %913 = vrot.lane.b32.xlu0 %v672, 120
    %v914 = vpop.permute.xlu0 %913
    %915 = vrot.lane.b32.xlu0 %v677, 120
    %v916 = vpop.permute.xlu0 %915
    %v917 = vsel %vm47, %v912, 0
    %v919 = vsel %vm47, %v914, 0
    %v921 = vsel %vm47, %v916, 0
    %923 = vmatprep.subr.mxu0 0.0
    %924 = vmatpush1.xpose.msra.mxu0 %v919
    %925 = vmatprep.subr.mxu0 0.0
    %926 = vmatpush1.xpose.msra.mxu0 %v921
    %927 = vmatprep.subr.mxu0 0.0
    %928 = vmatpush1.xpose.msra.mxu0 0.0
    %929 = vmatprep.subr.mxu0 0.0
    %930 = vmatpush1.xpose.msra.mxu0 0.0
    %931 = vmatprep.subr.mxu0 0.0
    %932 = vmatpush1.xpose.msra.mxu0 0.0
    %933 = vmatprep.subr.mxu0 0.0
    %934 = vmatpush1.xpose.msra.mxu0 0.0
    %935 = vmatprep.subr.mxu0 0.0
    %936 = vmatpush1.xpose.msra.mxu0 0.0
    %937 = vmatprep.subr.mxu0 0.0
    %938 = vmatpush1.xpose.msra.mxu0 0.0
    %939 = vmatprep.subr.mxu0 0.0
    %940 = vmatpush1.xpose.msra.mxu0 0.0
    %941 = vmatprep.subr.mxu0 0.0
    %942 = vmatpush1.xpose.msra.mxu0 0.0
    %943 = vmatprep.subr.mxu0 0.0
    %944 = vmatpush1.xpose.msra.mxu0 0.0
    %945 = vmatprep.subr.mxu0 0.0
    %946 = vmatpush1.xpose.msra.mxu0 0.0
    %947 = vmatprep.subr.mxu0 0.0
    %948 = vmatpush1.xpose.msra.mxu0 0.0
    %949 = vmatprep.subr.mxu0 0.0
    %950 = vmatpush1.xpose.msra.mxu0 0.0
    %951 = vmatprep.subr.mxu0 0.0
    %952 = vmatpush1.xpose.msra.mxu0 0.0
    %953 = vmatprep.subr.mxu0 0.0
    %954 = vmatpush1.xpose.msra.mxu0 0.0
    %955 = vmatprep.subr.mxu0 0.0
    %956 = vmatpush1.xpose.msra.mxu0 0.0
    %957 = vmatprep.subr.mxu0 0.0
    %958 = vmatpush1.xpose.msra.mxu0 0.0
    %959 = vmatprep.subr.mxu0 0.0
    %960 = vmatpush1.xpose.msra.mxu0 0.0
    %961 = vmatprep.subr.mxu0 0.0
    %962 = vmatpush1.xpose.msra.mxu0 0.0
    %963 = vmatprep.subr.mxu0 0.0
    %964 = vmatpush1.xpose.msra.mxu0 0.0
    %965 = vmatprep.subr.mxu0 0.0
    %966 = vmatpush1.xpose.msra.mxu0 0.0
    %967 = vmatprep.subr.mxu0 0.0
    %968 = vmatpush1.xpose.msra.mxu0 0.0
    %969 = vmatprep.subr.mxu0 0.0
    %970 = vmatpush1.xpose.msra.mxu0 0.0
    %971 = vmatprep.subr.mxu0 0.0
    %972 = vmatpush1.xpose.msra.mxu0 0.0
    %973 = vmatprep.subr.mxu0 0.0
    %974 = vmatpush1.xpose.msra.mxu0 0.0
    %975 = vmatprep.subr.mxu0 0.0
    %976 = vmatpush1.xpose.msra.mxu0 0.0
    %977 = vmatprep.subr.mxu0 0.0
    %978 = vmatpush1.xpose.msra.mxu0 0.0
    %979 = vmatprep.subr.mxu0 0.0
    %980 = vmatpush1.xpose.msra.mxu0 0.0
    %981 = vmatprep.subr.mxu0 0.0
    %982 = vmatpush1.xpose.msra.mxu0 0.0
    %983 = vmatprep.subr.mxu0 0.0
    %984 = vmatpush1.xpose.msra.mxu0 0.0
    %985 = vmatprep.subr.mxu0 0.0
    %986 = vmatpush1.xpose.msra.mxu0 0.0
    %987 = vmatprep.mubr.f32.mxu0 0.0
    %988 = vmatmul.mubr.f32.gmra.mrb[0].mxu0 %v917
    %v989 = vpop.f32.mrb[0].mxu0
    %v990 = vadd.f32 0.0, %v989
    %v991 = vpop.f32.mrb[0].mxu0
    %992 = vdwg.mxu0
    %v993 = vlaneseq
    %v994 = vshrl.u32 %v993, 7
    %v995 = vsub.s32 0, %v994
    %v996 = vrot.slane %v990, %v995
    %v997 = vadd.f32 %v908, %v996
    %v998 = vadd.f32 %v911, %v996
    %vm999 = vcmp.gt.f32.partialorder %v997, 0.0
    %vm1000 = vcmp.gt.f32.partialorder %v998, 0.0
    %v1001 = vmul.f32 %v997, 0.2
    %v1002 = vmul.f32 %v998, 0.2
    %v1003 = vsel %vm999, %v997, %v1001
    %v1004 = vsel %vm1000, %v998, %v1002
    %v1005 = vadd.f32 %v1003, %v39
    %v1006 = vadd.f32 %v1004, %v40
    %v1007 = vsel %vm234, %v1005, -inf
    %1008 = vmax.xlane.f32.xlu0 %v1007
    %v1009 = vpop.xlane.xlu0 %1008
    %v1010 = vsel %vm234, %v1006, -inf
    %1011 = vmax.xlane.f32.xlu0 %v1010
    %v1012 = vpop.xlane.xlu0 %1011
    %v1013 = vsub.f32 %v1005, %v1009
    %v1014 = vsub.f32 %v1006, %v1012
    %v1015 = vmul.f32 %v1013, 1.442695
    %v1016 = vpow.pop %v1015
    %v1017 = vmul.f32 %v1014, 1.442695
    %v1018 = vpow.pop %v1017
    %v1019 = vsel %vm234, %v1016, 0.0
    %1020 = vadd.xlane.f32.xlu0 %v1019
    %v1021 = vpop.xlane.xlu0 %1020
    %v1022 = vsel %vm234, %v1018, 0.0
    %1023 = vadd.xlane.f32.xlu0 %v1022
    %v1024 = vpop.xlane.xlu0 %1023
    %v1025 = vrcp.pop %v1021
    %v1026 = vrcp.pop %v1024
    %v1030 = vsel %vm234, %v1016, 0
    %v1033 = vsel %vm234, %v1018, 0
    %1035 = vmatprep.subr.mxu0 0.0
    %1036 = vmatpush1.msra.mxu0 %v914
    %1037 = vmatprep.subr.mxu0 0.0
    %1038 = vmatpush1.msra.mxu0 %v916
    %1039 = vmatprep.subr.mxu0 0.0
    %1040 = vmatpush1.msra.mxu0 0.0
    %1041 = vmatprep.subr.mxu0 0.0
    %1042 = vmatpush1.msra.mxu0 0.0
    %1043 = vmatprep.subr.mxu0 0.0
    %1044 = vmatpush1.msra.mxu0 0.0
    %1045 = vmatprep.subr.mxu0 0.0
    %1046 = vmatpush1.msra.mxu0 0.0
    %1047 = vmatprep.subr.mxu0 0.0
    %1048 = vmatpush1.msra.mxu0 0.0
    %1049 = vmatprep.subr.mxu0 0.0
    %1050 = vmatpush1.msra.mxu0 0.0
    %1051 = vmatprep.subr.mxu0 0.0
    %1052 = vmatpush1.msra.mxu0 0.0
    %1053 = vmatprep.subr.mxu0 0.0
    %1054 = vmatpush1.msra.mxu0 0.0
    %1055 = vmatprep.subr.mxu0 0.0
    %1056 = vmatpush1.msra.mxu0 0.0
    %1057 = vmatprep.subr.mxu0 0.0
    %1058 = vmatpush1.msra.mxu0 0.0
    %1059 = vmatprep.subr.mxu0 0.0
    %1060 = vmatpush1.msra.mxu0 0.0
    %1061 = vmatprep.subr.mxu0 0.0
    %1062 = vmatpush1.msra.mxu0 0.0
    %1063 = vmatprep.subr.mxu0 0.0
    %1064 = vmatpush1.msra.mxu0 0.0
    %1065 = vmatprep.subr.mxu0 0.0
    %1066 = vmatpush1.msra.mxu0 0.0
    %1067 = vmatprep.subr.mxu0 0.0
    %1068 = vmatpush1.msra.mxu0 0.0
    %1069 = vmatprep.subr.mxu0 0.0
    %1070 = vmatpush1.msra.mxu0 0.0
    %1071 = vmatprep.subr.mxu0 0.0
    %1072 = vmatpush1.msra.mxu0 0.0
    %1073 = vmatprep.subr.mxu0 0.0
    %1074 = vmatpush1.msra.mxu0 0.0
    %1075 = vmatprep.subr.mxu0 0.0
    %1076 = vmatpush1.msra.mxu0 0.0
    %1077 = vmatprep.subr.mxu0 0.0
    %1078 = vmatpush1.msra.mxu0 0.0
    %1079 = vmatprep.subr.mxu0 0.0
    %1080 = vmatpush1.msra.mxu0 0.0
    %1081 = vmatprep.subr.mxu0 0.0
    %1082 = vmatpush1.msra.mxu0 0.0
    %1083 = vmatprep.subr.mxu0 0.0
    %1084 = vmatpush1.msra.mxu0 0.0
    %1085 = vmatprep.subr.mxu0 0.0
    %1086 = vmatpush1.msra.mxu0 0.0
    %1087 = vmatprep.subr.mxu0 0.0
    %1088 = vmatpush1.msra.mxu0 0.0
    %1089 = vmatprep.subr.mxu0 0.0
    %1090 = vmatpush1.msra.mxu0 0.0
    %1091 = vmatprep.subr.mxu0 0.0
    %1092 = vmatpush1.msra.mxu0 0.0
    %1093 = vmatprep.subr.mxu0 0.0
    %1094 = vmatpush1.msra.mxu0 0.0
    %1095 = vmatprep.subr.mxu0 0.0
    %1096 = vmatpush1.msra.mxu0 0.0
    %1097 = vmatprep.subr.mxu0 0.0
    %1098 = vmatpush1.msra.mxu0 0.0
    %1099 = vmatprep.mubr.f32.mxu0 0.0
    %1100 = vmatmul.mubr.f32.gmra.mrb[0].mxu0 %v1030
    %v1101 = vpop.f32.mrb[0].mxu0
    %v1102 = vadd.f32 0.0, %v1101
    %v1103 = vpop.f32.mrb[0].mxu0
    %1104 = vmatprep.mubr.f32.mxu0 0.0
    %1105 = vmatmul.mubr.f32.gmra.mrb[0].mxu0 %v1033
    %v1106 = vpop.f32.mrb[0].mxu0
    %v1107 = vadd.f32 0.0, %v1106
    %v1108 = vpop.f32.mrb[0].mxu0
    %1109 = vdwg.mxu0
    %v1110 = vmul.f32 %v1102, %v1025
    %v1111 = vmul.f32 %v1107, %v1026
    %1114 = vrot.lane.b32.xlu0 %v1110, 8
    %v1115 = vpop.permute.xlu0 %1114
    %1116 = vrot.lane.b32.xlu0 %v1111, 8
    %v1117 = vpop.permute.xlu0 %1116
    %v1120 = vsel %vm47, %v886, %v1115
    %v1121 = vsel %vm47, %v887, %v1117
    %v1122 = vlaneseq
    %v1123 = vshrl.u32 %v1122, 7
    %v1124 = vsub.s32 0, %v1123
    %v1125 = vrot.slane %v598, %v1124
    %v1126 = vadd.f32 %v1120, %v1125
    %v1127 = vadd.f32 %v1121, %v1125
    %v1128 = vmax.f32 %v1126, 0.0
    %v1129 = vmax.f32 %v1127, 0.0
    %v1130 = vld [vmem:[#allocation2 + $0x58] sm:$0x1]
    %v1131 = vlaneseq
    %v1132 = vshrl.u32 %v1131, 7
    %v1133 = vsub.s32 0, %v1132
    %v1134 = vrot.slane %v1130, %v1133
    %v1135 = vmul.f32 %v1128, %v1134
    %v1136 = vmul.f32 %v1129, %v1134
    %v1137 = vld [vmem:[#allocation2 + $0x60] sm:$0x1]
    %v1138 = vlaneseq
    %v1139 = vshrl.u32 %v1138, 7
    %v1140 = vsub.s32 0, %v1139
    %v1141 = vrot.slane %v1137, %v1140
    %v1142 = vadd.f32 %v1135, %v1141
    %v1143 = vadd.f32 %v1136, %v1141
    %v1144 = vld [vmem:[%s2] sm:$0x3]
    %v1146 = vsel %vm234, %v1144, 0
    %1148 = vmatprep.subr.mxu0 0.0
    %1149 = vmatpush1.msra.mxu0 %v1142
    %1150 = vmatprep.subr.mxu0 0.0
    %1151 = vmatpush1.msra.mxu0 %v1143
    %1152 = vmatprep.subr.mxu0 0.0
    %1153 = vmatpush1.msra.mxu0 0.0
    %1154 = vmatprep.subr.mxu0 0.0
    %1155 = vmatpush1.msra.mxu0 0.0
    %1156 = vmatprep.subr.mxu0 0.0
    %1157 = vmatpush1.msra.mxu0 0.0
    %1158 = vmatprep.subr.mxu0 0.0
    %1159 = vmatpush1.msra.mxu0 0.0
    %1160 = vmatprep.subr.mxu0 0.0
    %1161 = vmatpush1.msra.mxu0 0.0
    %1162 = vmatprep.subr.mxu0 0.0
    %1163 = vmatpush1.msra.mxu0 0.0
    %1164 = vmatprep.subr.mxu0 0.0
    %1165 = vmatpush1.msra.mxu0 0.0
    %1166 = vmatprep.subr.mxu0 0.0
    %1167 = vmatpush1.msra.mxu0 0.0
    %1168 = vmatprep.subr.mxu0 0.0
    %1169 = vmatpush1.msra.mxu0 0.0
    %1170 = vmatprep.subr.mxu0 0.0
    %1171 = vmatpush1.msra.mxu0 0.0
    %1172 = vmatprep.subr.mxu0 0.0
    %1173 = vmatpush1.msra.mxu0 0.0
    %1174 = vmatprep.subr.mxu0 0.0
    %1175 = vmatpush1.msra.mxu0 0.0
    %1176 = vmatprep.subr.mxu0 0.0
    %1177 = vmatpush1.msra.mxu0 0.0
    %1178 = vmatprep.subr.mxu0 0.0
    %1179 = vmatpush1.msra.mxu0 0.0
    %1180 = vmatprep.subr.mxu0 0.0
    %1181 = vmatpush1.msra.mxu0 0.0
    %1182 = vmatprep.subr.mxu0 0.0
    %1183 = vmatpush1.msra.mxu0 0.0
    %1184 = vmatprep.subr.mxu0 0.0
    %1185 = vmatpush1.msra.mxu0 0.0
    %1186 = vmatprep.subr.mxu0 0.0
    %1187 = vmatpush1.msra.mxu0 0.0
    %1188 = vmatprep.subr.mxu0 0.0
    %1189 = vmatpush1.msra.mxu0 0.0
    %1190 = vmatprep.subr.mxu0 0.0
    %1191 = vmatpush1.msra.mxu0 0.0
    %1192 = vmatprep.subr.mxu0 0.0
    %1193 = vmatpush1.msra.mxu0 0.0
    %1194 = vmatprep.subr.mxu0 0.0
    %1195 = vmatpush1.msra.mxu0 0.0
    %1196 = vmatprep.subr.mxu0 0.0
    %1197 = vmatpush1.msra.mxu0 0.0
    %1198 = vmatprep.subr.mxu0 0.0
    %1199 = vmatpush1.msra.mxu0 0.0
    %1200 = vmatprep.subr.mxu0 0.0
    %1201 = vmatpush1.msra.mxu0 0.0
    %1202 = vmatprep.subr.mxu0 0.0
    %1203 = vmatpush1.msra.mxu0 0.0
    %1204 = vmatprep.subr.mxu0 0.0
    %1205 = vmatpush1.msra.mxu0 0.0
    %1206 = vmatprep.subr.mxu0 0.0
    %1207 = vmatpush1.msra.mxu0 0.0
    %1208 = vmatprep.subr.mxu0 0.0
    %1209 = vmatpush1.msra.mxu0 0.0
    %1210 = vmatprep.subr.mxu0 0.0
    %1211 = vmatpush1.msra.mxu0 0.0
    %1212 = vmatprep.mubr.f32.mxu0 0.0
    %1213 = vmatmul.mubr.f32.gmra.mrb[0].mxu0 %v1146
    %v1214 = vpop.f32.mrb[0].mxu0
    %v1215 = vadd.f32 0.0, %v1214
    %v1216 = vpop.f32.mrb[0].mxu0
    %1217 = vdwg.mxu0
    %v1218 = vld [vmem:[#allocation2 + $0x68] sm:$0xff]
    %v1219 = vld [vmem:[#allocation2 + $0x70] sm:$0xff]
    %v1220 = vld [vmem:[#allocation2 + $0x78] sm:$0x1]
    %v1221 = vlaneseq
    %v1222 = vshrl.u32 %v1221, 7
    %v1223 = vsub.s32 0, %v1222
    %v1224 = vrot.slane %v1220, %v1223
    %v1226 = vsel %vm234, %v1215, 0
    %1228 = vmatprep.subr.mxu0 0.0
    %1229 = vmatpush1.msra.mxu0 %v1218
    %1230 = vmatprep.subr.mxu0 0.0
    %1231 = vmatpush1.msra.mxu0 %v1219
    %1232 = vmatprep.subr.mxu0 0.0
    %1233 = vmatpush1.msra.mxu0 0.0
    %1234 = vmatprep.subr.mxu0 0.0
    %1235 = vmatpush1.msra.mxu0 0.0
    %1236 = vmatprep.subr.mxu0 0.0
    %1237 = vmatpush1.msra.mxu0 0.0
    %1238 = vmatprep.subr.mxu0 0.0
    %1239 = vmatpush1.msra.mxu0 0.0
    %1240 = vmatprep.subr.mxu0 0.0
    %1241 = vmatpush1.msra.mxu0 0.0
    %1242 = vmatprep.subr.mxu0 0.0
    %1243 = vmatpush1.msra.mxu0 0.0
    %1244 = vmatprep.subr.mxu0 0.0
    %1245 = vmatpush1.msra.mxu0 0.0
    %1246 = vmatprep.subr.mxu0 0.0
    %1247 = vmatpush1.msra.mxu0 0.0
    %1248 = vmatprep.subr.mxu0 0.0
    %1249 = vmatpush1.msra.mxu0 0.0
    %1250 = vmatprep.subr.mxu0 0.0
    %1251 = vmatpush1.msra.mxu0 0.0
    %1252 = vmatprep.subr.mxu0 0.0
    %1253 = vmatpush1.msra.mxu0 0.0
    %1254 = vmatprep.subr.mxu0 0.0
    %1255 = vmatpush1.msra.mxu0 0.0
    %1256 = vmatprep.subr.mxu0 0.0
    %1257 = vmatpush1.msra.mxu0 0.0
    %1258 = vmatprep.subr.mxu0 0.0
    %1259 = vmatpush1.msra.mxu0 0.0
    %1260 = vmatprep.subr.mxu0 0.0
    %1261 = vmatpush1.msra.mxu0 0.0
    %1262 = vmatprep.subr.mxu0 0.0
    %1263 = vmatpush1.msra.mxu0 0.0
    %1264 = vmatprep.subr.mxu0 0.0
    %1265 = vmatpush1.msra.mxu0 0.0
    %1266 = vmatprep.subr.mxu0 0.0
    %1267 = vmatpush1.msra.mxu0 0.0
    %1268 = vmatprep.subr.mxu0 0.0
    %1269 = vmatpush1.msra.mxu0 0.0
    %1270 = vmatprep.subr.mxu0 0.0
    %1271 = vmatpush1.msra.mxu0 0.0
    %1272 = vmatprep.subr.mxu0 0.0
    %1273 = vmatpush1.msra.mxu0 0.0
    %1274 = vmatprep.subr.mxu0 0.0
    %1275 = vmatpush1.msra.mxu0 0.0
    %1276 = vmatprep.subr.mxu0 0.0
    %1277 = vmatpush1.msra.mxu0 0.0
    %1278 = vmatprep.subr.mxu0 0.0
    %1279 = vmatpush1.msra.mxu0 0.0
    %1280 = vmatprep.subr.mxu0 0.0
    %1281 = vmatpush1.msra.mxu0 0.0
    %1282 = vmatprep.subr.mxu0 0.0
    %1283 = vmatpush1.msra.mxu0 0.0
    %1284 = vmatprep.subr.mxu0 0.0
    %1285 = vmatpush1.msra.mxu0 0.0
    %1286 = vmatprep.subr.mxu0 0.0
    %1287 = vmatpush1.msra.mxu0 0.0
    %1288 = vmatprep.subr.mxu0 0.0
    %1289 = vmatpush1.msra.mxu0 0.0
    %1290 = vmatprep.subr.mxu0 0.0
    %1291 = vmatpush1.msra.mxu0 0.0
    %1292 = vmatprep.mubr.f32.mxu0 0.0
    %1293 = vmatmul.mubr.f32.gmra.mrb[0].mxu0 %v1226
    %v1294 = vpop.f32.mrb[0].mxu0
    %v1295 = vadd.f32 %v1224, %v1294
    %v1296 = vpop.f32.mrb[0].mxu0
    %1297 = vdwg.mxu0
    %v1298 = vmax.f32 %v1295, 0.0
    %v1299 = vld [vmem:[#allocation2 + $0x80] sm:$0xff]
    %v1300 = vld [vmem:[#allocation2 + $0x88] sm:$0xff]
    %v1301 = vld [vmem:[#allocation2 + $0x90] sm:$0x1]
    %v1302 = vlaneseq
    %v1303 = vshrl.u32 %v1302, 7
    %v1304 = vsub.s32 0, %v1303
    %v1305 = vrot.slane %v1301, %v1304
    %v1307 = vsel %vm234, %v1298, 0
    %1309 = vmatprep.subr.mxu0 0.0
    %1310 = vmatpush1.msra.mxu0 %v1299
    %1311 = vmatprep.subr.mxu0 0.0
    %1312 = vmatpush1.msra.mxu0 %v1300
    %1313 = vmatprep.subr.mxu0 0.0
    %1314 = vmatpush1.msra.mxu0 0.0
    %1315 = vmatprep.subr.mxu0 0.0
    %1316 = vmatpush1.msra.mxu0 0.0
    %1317 = vmatprep.subr.mxu0 0.0
    %1318 = vmatpush1.msra.mxu0 0.0
    %1319 = vmatprep.subr.mxu0 0.0
    %1320 = vmatpush1.msra.mxu0 0.0
    %1321 = vmatprep.subr.mxu0 0.0
    %1322 = vmatpush1.msra.mxu0 0.0
    %1323 = vmatprep.subr.mxu0 0.0
    %1324 = vmatpush1.msra.mxu0 0.0
    %1325 = vmatprep.subr.mxu0 0.0
    %1326 = vmatpush1.msra.mxu0 0.0
    %1327 = vmatprep.subr.mxu0 0.0
    %1328 = vmatpush1.msra.mxu0 0.0
    %1329 = vmatprep.subr.mxu0 0.0
    %1330 = vmatpush1.msra.mxu0 0.0
    %1331 = vmatprep.subr.mxu0 0.0
    %1332 = vmatpush1.msra.mxu0 0.0
    %1333 = vmatprep.subr.mxu0 0.0
    %1334 = vmatpush1.msra.mxu0 0.0
    %1335 = vmatprep.subr.mxu0 0.0
    %1336 = vmatpush1.msra.mxu0 0.0
    %1337 = vmatprep.subr.mxu0 0.0
    %1338 = vmatpush1.msra.mxu0 0.0
    %1339 = vmatprep.subr.mxu0 0.0
    %1340 = vmatpush1.msra.mxu0 0.0
    %1341 = vmatprep.subr.mxu0 0.0
    %1342 = vmatpush1.msra.mxu0 0.0
    %1343 = vmatprep.subr.mxu0 0.0
    %1344 = vmatpush1.msra.mxu0 0.0
    %1345 = vmatprep.subr.mxu0 0.0
    %1346 = vmatpush1.msra.mxu0 0.0
    %1347 = vmatprep.subr.mxu0 0.0
    %1348 = vmatpush1.msra.mxu0 0.0
    %1349 = vmatprep.subr.mxu0 0.0
    %1350 = vmatpush1.msra.mxu0 0.0
    %1351 = vmatprep.subr.mxu0 0.0
    %1352 = vmatpush1.msra.mxu0 0.0
    %1353 = vmatprep.subr.mxu0 0.0
    %1354 = vmatpush1.msra.mxu0 0.0
    %1355 = vmatprep.subr.mxu0 0.0
    %1356 = vmatpush1.msra.mxu0 0.0
    %1357 = vmatprep.subr.mxu0 0.0
    %1358 = vmatpush1.msra.mxu0 0.0
    %1359 = vmatprep.subr.mxu0 0.0
    %1360 = vmatpush1.msra.mxu0 0.0
    %1361 = vmatprep.subr.mxu0 0.0
    %1362 = vmatpush1.msra.mxu0 0.0
    %1363 = vmatprep.subr.mxu0 0.0
    %1364 = vmatpush1.msra.mxu0 0.0
    %1365 = vmatprep.subr.mxu0 0.0
    %1366 = vmatpush1.msra.mxu0 0.0
    %1367 = vmatprep.subr.mxu0 0.0
    %1368 = vmatpush1.msra.mxu0 0.0
    %1369 = vmatprep.subr.mxu0 0.0
    %1370 = vmatpush1.msra.mxu0 0.0
    %1371 = vmatprep.subr.mxu0 0.0
    %1372 = vmatpush1.msra.mxu0 0.0
    %1373 = vmatprep.mubr.f32.mxu0 0.0
    %1374 = vmatmul.mubr.f32.gmra.mrb[0].mxu0 %v1307
    %v1375 = vpop.f32.mrb[0].mxu0
    %v1376 = vadd.f32 %v1305, %v1375
    %v1377 = vpop.f32.mrb[0].mxu0
    %1378 = vdwg.mxu0
    %v1379 = vmul.f32 %v1376, 0.5
    %v1380 = vtanh.pop %v1379
    %v1381 = vadd.f32 %v1380, 1.0
    %v1382 = vmul.f32 %v1381, 0.5
    %v1383 = vld [vmem:[%s3] sm:$0x3]
    %v1384 = vld [vmem:[#allocation2 + $0x98] sm:$0xff]
    %v1385 = vld [vmem:[#allocation2 + $0xa0] sm:$0xff]
    %v1386 = vld [vmem:[#allocation2 + $0xa8] sm:$0x1]
    %v1387 = vlaneseq
    %v1388 = vshrl.u32 %v1387, 7
    %v1389 = vsub.s32 0, %v1388
    %v1390 = vrot.slane %v1386, %v1389
    %v1392 = vsel %vm234, %v1383, 0
    %1394 = vmatprep.subr.mxu0 0.0
    %1395 = vmatpush1.msra.mxu0 %v1384
    %1396 = vmatprep.subr.mxu0 0.0
    %1397 = vmatpush1.msra.mxu0 %v1385
    %1398 = vmatprep.subr.mxu0 0.0
    %1399 = vmatpush1.msra.mxu0 0.0
    %1400 = vmatprep.subr.mxu0 0.0
    %1401 = vmatpush1.msra.mxu0 0.0
    %1402 = vmatprep.subr.mxu0 0.0
    %1403 = vmatpush1.msra.mxu0 0.0
    %1404 = vmatprep.subr.mxu0 0.0
    %1405 = vmatpush1.msra.mxu0 0.0
    %1406 = vmatprep.subr.mxu0 0.0
    %1407 = vmatpush1.msra.mxu0 0.0
    %1408 = vmatprep.subr.mxu0 0.0
    %1409 = vmatpush1.msra.mxu0 0.0
    %1410 = vmatprep.subr.mxu0 0.0
    %1411 = vmatpush1.msra.mxu0 0.0
    %1412 = vmatprep.subr.mxu0 0.0
    %1413 = vmatpush1.msra.mxu0 0.0
    %1414 = vmatprep.subr.mxu0 0.0
    %1415 = vmatpush1.msra.mxu0 0.0
    %1416 = vmatprep.subr.mxu0 0.0
    %1417 = vmatpush1.msra.mxu0 0.0
    %1418 = vmatprep.subr.mxu0 0.0
    %1419 = vmatpush1.msra.mxu0 0.0
    %1420 = vmatprep.subr.mxu0 0.0
    %1421 = vmatpush1.msra.mxu0 0.0
    %1422 = vmatprep.subr.mxu0 0.0
    %1423 = vmatpush1.msra.mxu0 0.0
    %1424 = vmatprep.subr.mxu0 0.0
    %1425 = vmatpush1.msra.mxu0 0.0
    %1426 = vmatprep.subr.mxu0 0.0
    %1427 = vmatpush1.msra.mxu0 0.0
    %1428 = vmatprep.subr.mxu0 0.0
    %1429 = vmatpush1.msra.mxu0 0.0
    %1430 = vmatprep.subr.mxu0 0.0
    %1431 = vmatpush1.msra.mxu0 0.0
    %1432 = vmatprep.subr.mxu0 0.0
    %1433 = vmatpush1.msra.mxu0 0.0
    %1434 = vmatprep.subr.mxu0 0.0
    %1435 = vmatpush1.msra.mxu0 0.0
    %1436 = vmatprep.subr.mxu0 0.0
    %1437 = vmatpush1.msra.mxu0 0.0
    %1438 = vmatprep.subr.mxu0 0.0
    %1439 = vmatpush1.msra.mxu0 0.0
    %1440 = vmatprep.subr.mxu0 0.0
    %1441 = vmatpush1.msra.mxu0 0.0
    %1442 = vmatprep.subr.mxu0 0.0
    %1443 = vmatpush1.msra.mxu0 0.0
    %1444 = vmatprep.subr.mxu0 0.0
    %1445 = vmatpush1.msra.mxu0 0.0
    %1446 = vmatprep.subr.mxu0 0.0
    %1447 = vmatpush1.msra.mxu0 0.0
    %1448 = vmatprep.subr.mxu0 0.0
    %1449 = vmatpush1.msra.mxu0 0.0
    %1450 = vmatprep.subr.mxu0 0.0
    %1451 = vmatpush1.msra.mxu0 0.0
    %1452 = vmatprep.subr.mxu0 0.0
    %1453 = vmatpush1.msra.mxu0 0.0
    %1454 = vmatprep.subr.mxu0 0.0
    %1455 = vmatpush1.msra.mxu0 0.0
    %1456 = vmatprep.subr.mxu0 0.0
    %1457 = vmatpush1.msra.mxu0 0.0
    %1458 = vmatprep.mubr.f32.mxu0 0.0
    %1459 = vmatmul.mubr.f32.gmra.mrb[0].mxu0 %v1392
    %v1460 = vpop.f32.mrb[0].mxu0
    %v1461 = vadd.f32 %v1390, %v1460
    %v1462 = vpop.f32.mrb[0].mxu0
    %1463 = vdwg.mxu0
    %v1464 = vld [vmem:[#allocation2 + $0xb0] sm:$0x1]
    %v1465 = vlaneseq
    %v1466 = vshrl.u32 %v1465, 7
    %v1467 = vsub.s32 0, %v1466
    %v1468 = vrot.slane %v1464, %v1467
    %v1469 = vmul.f32 %v1461, %v1468
    %v1470 = vld [vmem:[#allocation2 + $0xb8] sm:$0x1]
    %v1471 = vlaneseq
    %v1472 = vshrl.u32 %v1471, 7
    %v1473 = vsub.s32 0, %v1472
    %v1474 = vrot.slane %v1470, %v1473
    %v1475 = vadd.f32 %v1469, %v1474
    %v1476 = vmax.f32 %v1475, 0.0
    %v1477 = vld [vmem:[#allocation2 + $0xc0] sm:$0xff]
    %v1478 = vld [vmem:[#allocation2 + $0xc8] sm:$0xff]
    %v1479 = vld [vmem:[#allocation2 + $0xd0] sm:$0xff]
    %v1480 = vld [vmem:[#allocation2 + $0xd8] sm:$0xff]
    %v1481 = vld [vmem:[#allocation2 + $0xe0] sm:$0x1]
    %v1482 = vlaneseq
    %v1483 = vshrl.u32 %v1482, 7
    %v1484 = vsub.s32 0, %v1483
    %v1485 = vrot.slane %v1481, %v1484
    %vm1486 = vcmask 261120
    %v1488 = vsel %vm1486, %v1476, 0
    %1490 = vmatprep.subr.mxu0 0.0
    %1491 = vmatpush1.msra.mxu0 %v1477
    %1492 = vmatprep.subr.mxu0 0.0
    %1493 = vmatpush1.msra.mxu0 %v1478
    %1494 = vmatprep.subr.mxu0 0.0
    %1495 = vmatpush1.msra.mxu0 %v1479
    %1496 = vmatprep.subr.mxu0 0.0
    %1497 = vmatpush1.msra.mxu0 %v1480
    %1498 = vmatprep.subr.mxu0 0.0
    %1499 = vmatpush1.msra.mxu0 0.0
    %1500 = vmatprep.subr.mxu0 0.0
    %1501 = vmatpush1.msra.mxu0 0.0
    %1502 = vmatprep.subr.mxu0 0.0
    %1503 = vmatpush1.msra.mxu0 0.0
    %1504 = vmatprep.subr.mxu0 0.0
    %1505 = vmatpush1.msra.mxu0 0.0
    %1506 = vmatprep.subr.mxu0 0.0
    %1507 = vmatpush1.msra.mxu0 0.0
    %1508 = vmatprep.subr.mxu0 0.0
    %1509 = vmatpush1.msra.mxu0 0.0
    %1510 = vmatprep.subr.mxu0 0.0
    %1511 = vmatpush1.msra.mxu0 0.0
    %1512 = vmatprep.subr.mxu0 0.0
    %1513 = vmatpush1.msra.mxu0 0.0
    %1514 = vmatprep.subr.mxu0 0.0
    %1515 = vmatpush1.msra.mxu0 0.0
    %1516 = vmatprep.subr.mxu0 0.0
    %1517 = vmatpush1.msra.mxu0 0.0
    %1518 = vmatprep.subr.mxu0 0.0
    %1519 = vmatpush1.msra.mxu0 0.0
    %1520 = vmatprep.subr.mxu0 0.0
    %1521 = vmatpush1.msra.mxu0 0.0
    %1522 = vmatprep.subr.mxu0 0.0
    %1523 = vmatpush1.msra.mxu0 0.0
    %1524 = vmatprep.subr.mxu0 0.0
    %1525 = vmatpush1.msra.mxu0 0.0
    %1526 = vmatprep.subr.mxu0 0.0
    %1527 = vmatpush1.msra.mxu0 0.0
    %1528 = vmatprep.subr.mxu0 0.0
    %1529 = vmatpush1.msra.mxu0 0.0
    %1530 = vmatprep.subr.mxu0 0.0
    %1531 = vmatpush1.msra.mxu0 0.0
    %1532 = vmatprep.subr.mxu0 0.0
    %1533 = vmatpush1.msra.mxu0 0.0
    %1534 = vmatprep.subr.mxu0 0.0
    %1535 = vmatpush1.msra.mxu0 0.0
    %1536 = vmatprep.subr.mxu0 0.0
    %1537 = vmatpush1.msra.mxu0 0.0
    %1538 = vmatprep.subr.mxu0 0.0
    %1539 = vmatpush1.msra.mxu0 0.0
    %1540 = vmatprep.subr.mxu0 0.0
    %1541 = vmatpush1.msra.mxu0 0.0
    %1542 = vmatprep.subr.mxu0 0.0
    %1543 = vmatpush1.msra.mxu0 0.0
    %1544 = vmatprep.subr.mxu0 0.0
    %1545 = vmatpush1.msra.mxu0 0.0
    %1546 = vmatprep.subr.mxu0 0.0
    %1547 = vmatpush1.msra.mxu0 0.0
    %1548 = vmatprep.subr.mxu0 0.0
    %1549 = vmatpush1.msra.mxu0 0.0
    %1550 = vmatprep.subr.mxu0 0.0
    %1551 = vmatpush1.msra.mxu0 0.0
    %1552 = vmatprep.subr.mxu0 0.0
    %1553 = vmatpush1.msra.mxu0 0.0
    %1554 = vmatprep.mubr.f32.mxu0 0.0
    %1555 = vmatmul.mubr.f32.gmra.mrb[0].mxu0 %v1488
    %v1556 = vpop.f32.mrb[0].mxu0
    %v1557 = vadd.f32 %v1485, %v1556
    %v1558 = vpop.f32.mrb[0].mxu0
    %1559 = vdwg.mxu0
    %v1560 = vld [vmem:[#allocation2 + $0xe8] sm:$0x1]
    %v1561 = vlaneseq
    %v1562 = vshrl.u32 %v1561, 7
    %v1563 = vsub.s32 0, %v1562
    %v1564 = vrot.slane %v1560, %v1563
    %v1565 = vmul.f32 %v1557, %v1564
    %v1566 = vld [vmem:[#allocation2 + $0xf0] sm:$0x1]
    %v1567 = vlaneseq
    %v1568 = vshrl.u32 %v1567, 7
    %v1569 = vsub.s32 0, %v1568
    %v1570 = vrot.slane %v1566, %v1569
    %v1571 = vadd.f32 %v1565, %v1570
    %v1572 = vmax.f32 %v1571, 0.0
    %v1573 = vld [vmem:[#allocation2 + $0xf8] sm:$0xff]
    %v1574 = vld [vmem:[#allocation2 + $0x100] sm:$0xff]
    %v1575 = vld [vmem:[#allocation2 + $0x108] sm:$0xff]
    %v1576 = vld [vmem:[#allocation2 + $0x110] sm:$0xff]
    %v1577 = vld [vmem:[#allocation2 + $0x118] sm:$0x1]
    %v1578 = vlaneseq
    %v1579 = vshrl.u32 %v1578, 7
    %v1580 = vsub.s32 0, %v1579
    %v1581 = vrot.slane %v1577, %v1580
    %v1583 = vsel %vm1486, %v1572, 0
    %1585 = vmatprep.subr.mxu0 0.0
    %1586 = vmatpush1.msra.mxu0 %v1573
    %1587 = vmatprep.subr.mxu0 0.0
    %1588 = vmatpush1.msra.mxu0 %v1574
    %1589 = vmatprep.subr.mxu0 0.0
    %1590 = vmatpush1.msra.mxu0 %v1575
    %1591 = vmatprep.subr.mxu0 0.0
    %1592 = vmatpush1.msra.mxu0 %v1576
    %1593 = vmatprep.subr.mxu0 0.0
    %1594 = vmatpush1.msra.mxu0 0.0
    %1595 = vmatprep.subr.mxu0 0.0
    %1596 = vmatpush1.msra.mxu0 0.0
    %1597 = vmatprep.subr.mxu0 0.0
    %1598 = vmatpush1.msra.mxu0 0.0
    %1599 = vmatprep.subr.mxu0 0.0
    %1600 = vmatpush1.msra.mxu0 0.0
    %1601 = vmatprep.subr.mxu0 0.0
    %1602 = vmatpush1.msra.mxu0 0.0
    %1603 = vmatprep.subr.mxu0 0.0
    %1604 = vmatpush1.msra.mxu0 0.0
    %1605 = vmatprep.subr.mxu0 0.0
    %1606 = vmatpush1.msra.mxu0 0.0
    %1607 = vmatprep.subr.mxu0 0.0
    %1608 = vmatpush1.msra.mxu0 0.0
    %1609 = vmatprep.subr.mxu0 0.0
    %1610 = vmatpush1.msra.mxu0 0.0
    %1611 = vmatprep.subr.mxu0 0.0
    %1612 = vmatpush1.msra.mxu0 0.0
    %1613 = vmatprep.subr.mxu0 0.0
    %1614 = vmatpush1.msra.mxu0 0.0
    %1615 = vmatprep.subr.mxu0 0.0
    %1616 = vmatpush1.msra.mxu0 0.0
    %1617 = vmatprep.subr.mxu0 0.0
    %1618 = vmatpush1.msra.mxu0 0.0
    %1619 = vmatprep.subr.mxu0 0.0
    %1620 = vmatpush1.msra.mxu0 0.0
    %1621 = vmatprep.subr.mxu0 0.0
    %1622 = vmatpush1.msra.mxu0 0.0
    %1623 = vmatprep.subr.mxu0 0.0
    %1624 = vmatpush1.msra.mxu0 0.0
    %1625 = vmatprep.subr.mxu0 0.0
    %1626 = vmatpush1.msra.mxu0 0.0
    %1627 = vmatprep.subr.mxu0 0.0
    %1628 = vmatpush1.msra.mxu0 0.0
    %1629 = vmatprep.subr.mxu0 0.0
    %1630 = vmatpush1.msra.mxu0 0.0
    %1631 = vmatprep.subr.mxu0 0.0
    %1632 = vmatpush1.msra.mxu0 0.0
    %1633 = vmatprep.subr.mxu0 0.0
    %1634 = vmatpush1.msra.mxu0 0.0
    %1635 = vmatprep.subr.mxu0 0.0
    %1636 = vmatpush1.msra.mxu0 0.0
    %1637 = vmatprep.subr.mxu0 0.0
    %1638 = vmatpush1.msra.mxu0 0.0
    %1639 = vmatprep.subr.mxu0 0.0
    %1640 = vmatpush1.msra.mxu0 0.0
    %1641 = vmatprep.subr.mxu0 0.0
    %1642 = vmatpush1.msra.mxu0 0.0
    %1643 = vmatprep.subr.mxu0 0.0
    %1644 = vmatpush1.msra.mxu0 0.0
    %1645 = vmatprep.subr.mxu0 0.0
    %1646 = vmatpush1.msra.mxu0 0.0
    %1647 = vmatprep.subr.mxu0 0.0
    %1648 = vmatpush1.msra.mxu0 0.0
    %1649 = vmatprep.mubr.f32.mxu0 0.0
    %1650 = vmatmul.mubr.f32.gmra.mrb[0].mxu0 %v1583
    %v1651 = vpop.f32.mrb[0].mxu0
    %v1652 = vadd.f32 %v1581, %v1651
    %v1653 = vpop.f32.mrb[0].mxu0
    %1654 = vdwg.mxu0
    %v1655 = vld [vmem:[#allocation2 + $0x120] sm:$0x1]
    %v1656 = vlaneseq
    %v1657 = vshrl.u32 %v1656, 7
    %v1658 = vsub.s32 0, %v1657
    %v1659 = vrot.slane %v1655, %v1658
    %v1660 = vmul.f32 %v1652, %v1659
    %v1661 = vld [vmem:[#allocation2 + $0x128] sm:$0x1]
    %v1662 = vlaneseq
    %v1663 = vshrl.u32 %v1662, 7
    %v1664 = vsub.s32 0, %v1663
    %v1665 = vrot.slane %v1661, %v1664
    %v1666 = vadd.f32 %v1660, %v1665
    %v1667 = vmax.f32 %v1666, 0.0
    %v1668 = vld [vmem:[#allocation2 + $0x130] sm:$0xff]
    %v1669 = vld [vmem:[#allocation2 + $0x138] sm:$0xff]
    %v1670 = vld [vmem:[#allocation2 + $0x140] sm:$0x1]
    %v1671 = vlaneseq
    %v1672 = vshrl.u32 %v1671, 7
    %v1673 = vsub.s32 0, %v1672
    %v1674 = vrot.slane %v1670, %v1673
    %v1676 = vsel %vm234, %v1667, 0
    %1678 = vmatprep.subr.mxu0 0.0
    %1679 = vmatpush1.msra.mxu0 %v1668
    %1680 = vmatprep.subr.mxu0 0.0
    %1681 = vmatpush1.msra.mxu0 %v1669
    %1682 = vmatprep.subr.mxu0 0.0
    %1683 = vmatpush1.msra.mxu0 0.0
    %1684 = vmatprep.subr.mxu0 0.0
    %1685 = vmatpush1.msra.mxu0 0.0
    %1686 = vmatprep.subr.mxu0 0.0
    %1687 = vmatpush1.msra.mxu0 0.0
    %1688 = vmatprep.subr.mxu0 0.0
    %1689 = vmatpush1.msra.mxu0 0.0
    %1690 = vmatprep.subr.mxu0 0.0
    %1691 = vmatpush1.msra.mxu0 0.0
    %1692 = vmatprep.subr.mxu0 0.0
    %1693 = vmatpush1.msra.mxu0 0.0
    %1694 = vmatprep.subr.mxu0 0.0
    %1695 = vmatpush1.msra.mxu0 0.0
    %1696 = vmatprep.subr.mxu0 0.0
    %1697 = vmatpush1.msra.mxu0 0.0
    %1698 = vmatprep.subr.mxu0 0.0
    %1699 = vmatpush1.msra.mxu0 0.0
    %1700 = vmatprep.subr.mxu0 0.0
    %1701 = vmatpush1.msra.mxu0 0.0
    %1702 = vmatprep.subr.mxu0 0.0
    %1703 = vmatpush1.msra.mxu0 0.0
    %1704 = vmatprep.subr.mxu0 0.0
    %1705 = vmatpush1.msra.mxu0 0.0
    %1706 = vmatprep.subr.mxu0 0.0
    %1707 = vmatpush1.msra.mxu0 0.0
    %1708 = vmatprep.subr.mxu0 0.0
    %1709 = vmatpush1.msra.mxu0 0.0
    %1710 = vmatprep.subr.mxu0 0.0
    %1711 = vmatpush1.msra.mxu0 0.0
    %1712 = vmatprep.subr.mxu0 0.0
    %1713 = vmatpush1.msra.mxu0 0.0
    %1714 = vmatprep.subr.mxu0 0.0
    %1715 = vmatpush1.msra.mxu0 0.0
    %1716 = vmatprep.subr.mxu0 0.0
    %1717 = vmatpush1.msra.mxu0 0.0
    %1718 = vmatprep.subr.mxu0 0.0
    %1719 = vmatpush1.msra.mxu0 0.0
    %1720 = vmatprep.subr.mxu0 0.0
    %1721 = vmatpush1.msra.mxu0 0.0
    %1722 = vmatprep.subr.mxu0 0.0
    %1723 = vmatpush1.msra.mxu0 0.0
    %1724 = vmatprep.subr.mxu0 0.0
    %1725 = vmatpush1.msra.mxu0 0.0
    %1726 = vmatprep.subr.mxu0 0.0
    %1727 = vmatpush1.msra.mxu0 0.0
    %1728 = vmatprep.subr.mxu0 0.0
    %1729 = vmatpush1.msra.mxu0 0.0
    %1730 = vmatprep.subr.mxu0 0.0
    %1731 = vmatpush1.msra.mxu0 0.0
    %1732 = vmatprep.subr.mxu0 0.0
    %1733 = vmatpush1.msra.mxu0 0.0
    %1734 = vmatprep.subr.mxu0 0.0
    %1735 = vmatpush1.msra.mxu0 0.0
    %1736 = vmatprep.subr.mxu0 0.0
    %1737 = vmatpush1.msra.mxu0 0.0
    %1738 = vmatprep.subr.mxu0 0.0
    %1739 = vmatpush1.msra.mxu0 0.0
    %1740 = vmatprep.subr.mxu0 0.0
    %1741 = vmatpush1.msra.mxu0 0.0
    %1742 = vmatprep.mubr.f32.mxu0 0.0
    %1743 = vmatmul.mubr.f32.gmra.mrb[0].mxu0 %v1676
    %v1744 = vpop.f32.mrb[0].mxu0
    %v1745 = vadd.f32 %v1674, %v1744
    %v1746 = vpop.f32.mrb[0].mxu0
    %1747 = vdwg.mxu0
    %v1748 = vmul.f32 %v1745, 0.5
    %v1749 = vtanh.pop %v1748
    %v1750 = vadd.f32 %v1749, 1.0
    %v1751 = vmul.f32 %v1750, 0.5
    %1753 = vrot.lane.b32.xlu0 %v1751, 1
    %v1754 = vpop.permute.xlu0 %1753
    %vm1756 = vcmask 7168
    %v1757 = vsel %vm1756, %v1382, %v1754
    %v1758 = vld [vmem:[#allocation2 + $0x148] sm:$0x1f]
    %v1759 = vld [vmem:[#allocation2 + $0x150] sm:$0x1]
    %v1760 = vlaneseq
    %v1761 = vshrl.u32 %v1760, 7
    %v1762 = vsub.s32 0, %v1761
    %v1763 = vrot.slane %v1759, %v1762
    %vm1764 = vcmask 39936
    %v1766 = vsel %vm1764, %v1757, 0
    %vm1768 = vcmask 1044480
    %v1770 = vsel %vm1768, %v1758, 0
    %1772 = vmatprep.subr.mxu0 0.0
    %1773 = vmatpush1.msra.mxu0 %v1770
    %1774 = vmatprep.subr.mxu0 0.0
    %1775 = vmatpush1.msra.mxu0 0.0
    %1776 = vmatprep.subr.mxu0 0.0
    %1777 = vmatpush1.msra.mxu0 0.0
    %1778 = vmatprep.subr.mxu0 0.0
    %1779 = vmatpush1.msra.mxu0 0.0
    %1780 = vmatprep.subr.mxu0 0.0
    %1781 = vmatpush1.msra.mxu0 0.0
    %1782 = vmatprep.subr.mxu0 0.0
    %1783 = vmatpush1.msra.mxu0 0.0
    %1784 = vmatprep.subr.mxu0 0.0
    %1785 = vmatpush1.msra.mxu0 0.0
    %1786 = vmatprep.subr.mxu0 0.0
    %1787 = vmatpush1.msra.mxu0 0.0
    %1788 = vmatprep.subr.mxu0 0.0
    %1789 = vmatpush1.msra.mxu0 0.0
    %1790 = vmatprep.subr.mxu0 0.0
    %1791 = vmatpush1.msra.mxu0 0.0
    %1792 = vmatprep.subr.mxu0 0.0
    %1793 = vmatpush1.msra.mxu0 0.0
    %1794 = vmatprep.subr.mxu0 0.0
    %1795 = vmatpush1.msra.mxu0 0.0
    %1796 = vmatprep.subr.mxu0 0.0
    %1797 = vmatpush1.msra.mxu0 0.0
    %1798 = vmatprep.subr.mxu0 0.0
    %1799 = vmatpush1.msra.mxu0 0.0
    %1800 = vmatprep.subr.mxu0 0.0
    %1801 = vmatpush1.msra.mxu0 0.0
    %1802 = vmatprep.subr.mxu0 0.0
    %1803 = vmatpush1.msra.mxu0 0.0
    %1804 = vmatprep.subr.mxu0 0.0
    %1805 = vmatpush1.msra.mxu0 0.0
    %1806 = vmatprep.subr.mxu0 0.0
    %1807 = vmatpush1.msra.mxu0 0.0
    %1808 = vmatprep.subr.mxu0 0.0
    %1809 = vmatpush1.msra.mxu0 0.0
    %1810 = vmatprep.subr.mxu0 0.0
    %1811 = vmatpush1.msra.mxu0 0.0
    %1812 = vmatprep.subr.mxu0 0.0
    %1813 = vmatpush1.msra.mxu0 0.0
    %1814 = vmatprep.subr.mxu0 0.0
    %1815 = vmatpush1.msra.mxu0 0.0
    %1816 = vmatprep.subr.mxu0 0.0
    %1817 = vmatpush1.msra.mxu0 0.0
    %1818 = vmatprep.subr.mxu0 0.0
    %1819 = vmatpush1.msra.mxu0 0.0
    %1820 = vmatprep.subr.mxu0 0.0
    %1821 = vmatpush1.msra.mxu0 0.0
    %1822 = vmatprep.subr.mxu0 0.0
    %1823 = vmatpush1.msra.mxu0 0.0
    %1824 = vmatprep.subr.mxu0 0.0
    %1825 = vmatpush1.msra.mxu0 0.0
    %1826 = vmatprep.subr.mxu0 0.0
    %1827 = vmatpush1.msra.mxu0 0.0
    %1828 = vmatprep.subr.mxu0 0.0
    %1829 = vmatpush1.msra.mxu0 0.0
    %1830 = vmatprep.subr.mxu0 0.0
    %1831 = vmatpush1.msra.mxu0 0.0
    %1832 = vmatprep.subr.mxu0 0.0
    %1833 = vmatpush1.msra.mxu0 0.0
    %1834 = vmatprep.subr.mxu0 0.0
    %1835 = vmatpush1.msra.mxu0 0.0
    %1836 = vmatprep.mubr.f32.mxu0 0.0
    %1837 = vmatmul.mubr.f32.gmra.mrb[0].mxu0 %v1766
    %v1838 = vpop.f32.mrb[0].mxu0
    %v1839 = vadd.f32 %v1763, %v1838
    %v1840 = vpop.f32.mrb[0].mxu0
    %1841 = vdwg.mxu0
    %v1842 = vmax.f32 %v1839, 0.0
    %v1843 = vld [vmem:[#allocation2 + $0x158] sm:$0xff]
    %v1844 = vld [vmem:[#allocation2 + $0x160] sm:$0xff]
    %v1845 = vld [vmem:[#allocation2 + $0x168] sm:$0x1]
    %v1846 = vlaneseq
    %v1847 = vshrl.u32 %v1846, 7
    %v1848 = vsub.s32 0, %v1847
    %v1849 = vrot.slane %v1845, %v1848
    %v1851 = vsel %vm234, %v1842, 0
    %1853 = vmatprep.subr.mxu0 0.0
    %1854 = vmatpush1.msra.mxu0 %v1843
    %1855 = vmatprep.subr.mxu0 0.0
    %1856 = vmatpush1.msra.mxu0 %v1844
    %1857 = vmatprep.subr.mxu0 0.0
    %1858 = vmatpush1.msra.mxu0 0.0
    %1859 = vmatprep.subr.mxu0 0.0
    %1860 = vmatpush1.msra.mxu0 0.0
    %1861 = vmatprep.subr.mxu0 0.0
    %1862 = vmatpush1.msra.mxu0 0.0
    %1863 = vmatprep.subr.mxu0 0.0
    %1864 = vmatpush1.msra.mxu0 0.0
    %1865 = vmatprep.subr.mxu0 0.0
    %1866 = vmatpush1.msra.mxu0 0.0
    %1867 = vmatprep.subr.mxu0 0.0
    %1868 = vmatpush1.msra.mxu0 0.0
    %1869 = vmatprep.subr.mxu0 0.0
    %1870 = vmatpush1.msra.mxu0 0.0
    %1871 = vmatprep.subr.mxu0 0.0
    %1872 = vmatpush1.msra.mxu0 0.0
    %1873 = vmatprep.subr.mxu0 0.0
    %1874 = vmatpush1.msra.mxu0 0.0
    %1875 = vmatprep.subr.mxu0 0.0
    %1876 = vmatpush1.msra.mxu0 0.0
    %1877 = vmatprep.subr.mxu0 0.0
    %1878 = vmatpush1.msra.mxu0 0.0
    %1879 = vmatprep.subr.mxu0 0.0
    %1880 = vmatpush1.msra.mxu0 0.0
    %1881 = vmatprep.subr.mxu0 0.0
    %1882 = vmatpush1.msra.mxu0 0.0
    %1883 = vmatprep.subr.mxu0 0.0
    %1884 = vmatpush1.msra.mxu0 0.0
    %1885 = vmatprep.subr.mxu0 0.0
    %1886 = vmatpush1.msra.mxu0 0.0
    %1887 = vmatprep.subr.mxu0 0.0
    %1888 = vmatpush1.msra.mxu0 0.0
    %1889 = vmatprep.subr.mxu0 0.0
    %1890 = vmatpush1.msra.mxu0 0.0
    %1891 = vmatprep.subr.mxu0 0.0
    %1892 = vmatpush1.msra.mxu0 0.0
    %1893 = vmatprep.subr.mxu0 0.0
    %1894 = vmatpush1.msra.mxu0 0.0
    %1895 = vmatprep.subr.mxu0 0.0
    %1896 = vmatpush1.msra.mxu0 0.0
    %1897 = vmatprep.subr.mxu0 0.0
    %1898 = vmatpush1.msra.mxu0 0.0
    %1899 = vmatprep.subr.mxu0 0.0
    %1900 = vmatpush1.msra.mxu0 0.0
    %1901 = vmatprep.subr.mxu0 0.0
    %1902 = vmatpush1.msra.mxu0 0.0
    %1903 = vmatprep.subr.mxu0 0.0
    %1904 = vmatpush1.msra.mxu0 0.0
    %1905 = vmatprep.subr.mxu0 0.0
    %1906 = vmatpush1.msra.mxu0 0.0
    %1907 = vmatprep.subr.mxu0 0.0
    %1908 = vmatpush1.msra.mxu0 0.0
    %1909 = vmatprep.subr.mxu0 0.0
    %1910 = vmatpush1.msra.mxu0 0.0
    %1911 = vmatprep.subr.mxu0 0.0
    %1912 = vmatpush1.msra.mxu0 0.0
    %1913 = vmatprep.subr.mxu0 0.0
    %1914 = vmatpush1.msra.mxu0 0.0
    %1915 = vmatprep.subr.mxu0 0.0
    %1916 = vmatpush1.msra.mxu0 0.0
    %1917 = vmatprep.mubr.f32.mxu0 0.0
    %1918 = vmatmul.mubr.f32.gmra.mrb[0].mxu0 %v1851
    %v1919 = vpop.f32.mrb[0].mxu0
    %v1920 = vadd.f32 %v1849, %v1919
    %v1921 = vpop.f32.mrb[0].mxu0
    %1922 = vdwg.mxu0
    %v1923 = vmul.f32 %v1920, 0.5
    %v1924 = vtanh.pop %v1923
    %v1925 = vadd.f32 %v1924, 1.0
    %v1926 = vmul.f32 %v1925, 0.5
    %vm1927 = vcmask 17408
    %1928 = vst.msk [vmem:[#allocation5] sm:$0x3] %vm1927, %v1926
    // Predicated region
    $region26: #{_lambda_.1} parent=1 // pred_check
      _
    $region27: #{_lambda_.1} parent=1 // pred_check_branch
      %1930 = sbr.rel (0) target = $region29
    $region28: #{_lambda_.1} parent=1 // pred_region
      %s1932 = ssub.s32 32, 32
      %1933 = vsyncadd [#allocation4], %s1932
      %s1935 = sshll.u32 [#allocation5], 4
      %s1936 = int_to_ptr.vmem [resolvable:$true] %s1935
      %1938 = dma.vmem_to_hbm [thread:$0]  %s1936, 32, %s5, [#allocation4]
    $region29: #{_lambda_.1} parent=1 // pred_fallthru
      _
    // Predicated region
    $region30: #{_lambda_.1} parent=1 // pred_check
      _
    $region31: #{_lambda_.1} parent=1 // pred_check_branch
      %1940 = sbr.rel (0) target = $region33
    $region32: #{_lambda_.1} parent=1 // pred_region
      %1941 = dma.done [#allocation4], 32
    $region33: #{_lambda_.1} parent=1 // pred_fallthru
      _
    %1942 = vsyncpa [#allocation3], 1
    %1943 = vsyncpa [#allocation4], 1

</llo_original>
